<compile_context>
chip_gen: v6e
topology: v6e:2x2x1
jax: 0.10.0
libtpu: 0.0.40
codegen_flags: <defaults>
</compile_context>

<pallas_src>
import functools

import jax
import jax.numpy as jnp
from jax.experimental import pallas as pl
from jax.experimental.pallas import tpu as pltpu


def self_attention_kernel(x_ref, orig_ref, w1t_ref, w2t_ref, out_ref, pen_ref,
                          *, flatten_out):
    bt, S, H = x_ref.shape                       # block of `bt` batch elements
    hops = w2t_ref.shape[1]

    x_bf = x_ref[...]                            # [bt, S, H] bf16 (loaded once)
    w1t = w1t_ref[...]                           # [H, U]     bf16
    w2t = w2t_ref[...]                           # [U, hops]  bf16

    # --- shared-weight matmuls, batch folded into the MXU M dimension --------
    xf = x_bf.reshape(bt * S, H)
    y1 = jnp.tanh(jnp.dot(xf, w1t, preferred_element_type=jnp.float32))  # [bt*S, U] f32
    scores = jnp.dot(y1.astype(jnp.bfloat16), w2t,
                     preferred_element_type=jnp.float32)                 # [bt*S, hops] f32

    # --- [bt, hops, S] layout: S on the lane axis -----------------------------
    scores_t = jnp.transpose(scores.reshape(bt, S, hops), (0, 2, 1))     # [bt, hops, S]

    # additive pad mask from token ids, broadcast over hops
    pad_bias = jnp.where(orig_ref[...] == 0,
                         jnp.float32(-999999.0), jnp.float32(0.0))       # [bt, 1, S]
    scores_t = scores_t + pad_bias

    # --- softmax over the sequence (lane) axis --------------------------------
    m = jnp.max(scores_t, axis=2, keepdims=True)                         # [bt, hops, 1]
    e = jnp.exp(scores_t - m)                                            # [bt, hops, S]
    denom = jnp.sum(e, axis=2, keepdims=True)                            # [bt, hops, 1]
    attn = e * pl.reciprocal(denom, approx=True)                         # [bt, hops, S] f32

    # --- output1[b,k,:] = attn[b,k,:] @ x[b]   ([hops,S] @ [S,H]) -------------
    out = jnp.einsum("bks,bsh->bkh", attn.astype(jnp.bfloat16), x_bf,
                     preferred_element_type=jnp.float32)                 # [bt, hops, H] f32
    if flatten_out:
        # lane-dense store: out_ref is [bt, 1, hops*H]; hops is small & static
        for k in range(hops):
            out_ref[:, :, k * H:(k + 1) * H] = out[:, k:k + 1, :]
    else:
        out_ref[...] = out                                               # [bt, hops, H]

    # --- penalization: sqrt(||A A^T - I||_F^2 + 1e-10) per batch --------------
    aat = jnp.einsum("bks,bjs->bkj", attn, attn,
                     preferred_element_type=jnp.float32)                 # [bt, hops, hops]
    row = jax.lax.broadcasted_iota(jnp.int32, (hops, hops), 0)
    col = jax.lax.broadcasted_iota(jnp.int32, (hops, hops), 1)
    eye = (row == col).astype(jnp.float32)
    mat = aat - eye[None, :, :]
    sq = mat * mat
    tot = jnp.sum(jnp.sum(sq, axis=2, keepdims=True), axis=1, keepdims=True)  # [bt,1,1]
    pen_ref[...] = jnp.sqrt(tot + 1e-10)


def _device_kind():
    try:
        return jax.devices()[0].device_kind.lower()
    except Exception:
        return ""


def _vmem_params(kind):
    """Returns (per-step tile budget bytes, scoped vmem_limit_bytes, min grid steps)."""
    if "v7" in kind or "7x" in kind:
        # 64 MiB physical VMEM per TensorCore, 2 TCs: keep >= 4 grid steps so
        # both cores get work and the software pipeline has depth.
        return 28 * 1024 * 1024, 44 * 1024 * 1024, 4
    # v5e / v6e (128 MiB physical VMEM) and conservative default.
    return 44 * 1024 * 1024, 64 * 1024 * 1024, 2


def _per_batch_vmem_bytes(S, H, U, hops):
    """VMEM bytes per batch element, including kernel intermediates."""
    io = 2 * (2 * S * H            # x bf16 (double-buffered)
              + 4 * 8 * S          # token ids [1, S] int32, sublane-padded to 8
              + 4 * hops * H       # output1 f32
              + 4 * 8)             # penalty
    inter = (6 * S * U             # y1 f32 + bf16 copy
             + 16 * S * hops       # scores / scores_t / e / attn f32 + attn bf16
             + 4 * S * H           # relayout headroom around x
             + 12 * hops * H       # out f32 + store staging
             + 8 * hops * hops)    # aat + mat
    return io + inter


def _pick_block_b(B, S, H, U, hops, kind):
    budget, _, min_steps = _vmem_params(kind)
    max_bb = B // min_steps if B >= min_steps else B          # keep >= min_steps grid steps
    max_bb = max(1, max_bb)
    cap = max(1, min(max_bb, budget // max(_per_batch_vmem_bytes(S, H, U, hops), 1)))
    bb = 1
    for d in range(1, min(B, cap) + 1):
        if B % d == 0:
            bb = d
    return bb


def self_attention(x, input_origin, w1t, w2t, attention_hops, block_b=None):
    B, S, H = x.shape
    U = w1t.shape[1]
    hops = attention_hops

    kind = _device_kind()
    _, vmem_limit, _ = _vmem_params(kind)
    if block_b is None:
        block_b = _pick_block_b(B, S, H, U, hops, kind)
    assert B % block_b == 0, "block_b must divide the batch size"

    # bf16 I/O (no-ops if the surrounding model already runs bf16).
    x_bf = x.astype(jnp.bfloat16)
    w1t_bf = w1t.astype(jnp.bfloat16)
    w2t_bf = w2t.astype(jnp.bfloat16)
    orig = input_origin.astype(jnp.int32).reshape(B, 1, S)

    flatten_out = (H % 128 != 0)   # lane-dense output when H alone is not lane-aligned
    kernel = functools.partial(self_attention_kernel, flatten_out=flatten_out)

    if flatten_out:
        out_shape1 = jax.ShapeDtypeStruct((B, 1, hops * H), jnp.float32)
        out_spec1 = pl.BlockSpec((block_b, 1, hops * H), lambda i: (i, 0, 0))
    else:
        out_shape1 = jax.ShapeDtypeStruct((B, hops, H), jnp.float32)
        out_spec1 = pl.BlockSpec((block_b, hops, H), lambda i: (i, 0, 0))

    cost = pl.CostEstimate(
        flops=2 * B * S * H * U + 2 * B * S * U * hops
              + 2 * B * hops * S * H + 2 * B * hops * hops * S,
        transcendentals=B * S * U + B * hops * S,
        bytes_accessed=2 * B * S * H + 4 * B * S + 2 * (H * U + U * hops)
                       + 4 * B * hops * H + 4 * B,
    )

    out, pen_b = pl.pallas_call(
        kernel,
        out_shape=(out_shape1, jax.ShapeDtypeStruct((B, 1, 1), jnp.float32)),
        grid_spec=pltpu.PrefetchScalarGridSpec(
            num_scalar_prefetch=0,
            grid=(B // block_b,),
            in_specs=[
                pl.BlockSpec((block_b, S, H), lambda i: (i, 0, 0)),   # x (bf16)
                pl.BlockSpec((block_b, 1, S), lambda i: (i, 0, 0)),   # token ids
                pl.BlockSpec((H, U), lambda i: (0, 0)),               # w1t (bf16)
                pl.BlockSpec((U, hops), lambda i: (0, 0)),            # w2t (bf16)
            ],
            out_specs=[
                out_spec1,
                pl.BlockSpec((block_b, 1, 1), lambda i: (i, 0, 0)),   # per-batch penalty
            ],
        ),
        compiler_params=pltpu.CompilerParams(
            dimension_semantics=("parallel",),
            vmem_limit_bytes=vmem_limit,
        ),
        cost_estimate=cost,
    )(x_bf, orig, w1t_bf, w2t_bf)

    if flatten_out:
        out = out.reshape(B, hops, H)
    penalty = jnp.sum(pen_b) / B
    return out, penalty


def reference(x, input_origin, w1t, w2t, hops):
    # pure-JAX float32 reference matching the PyTorch forward (eval mode)
    y1 = jnp.tanh(jnp.einsum("bsh,hu->bsu", x, w1t))
    scores = jnp.einsum("bsu,uk->bsk", y1, w2t)            # [B, S, hops]
    attn = jnp.transpose(scores, (0, 2, 1))                # [B, hops, S]
    mask = (input_origin[:, None, :] == 0).astype(jnp.float32)
    attn = attn + (-999999.0) * mask
    attn = jax.nn.softmax(attn, axis=2)
    out = jnp.einsum("bks,bsh->bkh", attn, x)
    aat = jnp.einsum("bks,bjs->bkj", attn, attn)
    mat = aat - jnp.eye(hops)[None]
    ret = jnp.sqrt(jnp.sum(mat ** 2, axis=(1, 2)) + 1e-10)
    pen = jnp.sum(ret) / x.shape[0]
    return out, pen


if __name__ == "__main__":
    B, S, H = 8, 8, 32          # batch, seq_len, input_size
    U, HOPS = 32, 10            # attention_unit, attention_hops

    key = jax.random.PRNGKey(0)
    kx, korig, kw1, kw2 = jax.random.split(key, 4)

    x = jax.random.normal(kx, (B, S, H), dtype=jnp.float32)
    # token ids with some pads (== 0)
    input_origin = jax.random.randint(korig, (B, S), 0, 5, dtype=jnp.int32)

    # deterministic Linear-style init (uniform in [-1/sqrt(fan_in), 1/sqrt(fan_in)])
    b1 = 1.0 / (H ** 0.5)
    b2 = 1.0 / (U ** 0.5)
    w1 = jax.random.uniform(kw1, (U, H), jnp.float32, -b1, b1)     # ws1.weight
    w2 = jax.random.uniform(kw2, (HOPS, U), jnp.float32, -b2, b2)  # ws2.weight
    w1t = w1.T   # [H, U]
    w2t = w2.T   # [U, HOPS]

    out, pen = self_attention(x, input_origin, w1t, w2t, HOPS)
    out = jax.block_until_ready(out)
    pen = jax.block_until_ready(pen)

    ref_out, ref_pen = reference(x, input_origin, w1t, w2t, HOPS)
    assert out.shape == (B, HOPS, H)
    # bf16 MXU operands + approximate reciprocal -> loosen tolerance vs f32 reference
    assert jnp.allclose(out, ref_out, atol=2e-2, rtol=2e-2), "output1 mismatch"
    assert jnp.allclose(pen, ref_pen, atol=2e-2, rtol=2e-2), "penalty mismatch"

    print("KERNEL_OK")
</pallas_src>

<mosaic_0001>
module attributes {stable_mosaic.version = 11 : i64} {
  func.func @self_attention_kernel(%arg0: i32, %arg1: memref<4x8x32xbf16, #tpu.memory_space<vmem>>, %arg2: memref<4x1x8xi32, #tpu.memory_space<vmem>>, %arg3: memref<32x32xbf16, #tpu.memory_space<vmem>>, %arg4: memref<32x10xbf16, #tpu.memory_space<vmem>>, %arg5: memref<4x1x320xf32, #tpu.memory_space<vmem>>, %arg6: memref<4x1x1xf32, #tpu.memory_space<vmem>>) attributes {dimension_semantics = [#tpu.dimension_semantics<parallel>], iteration_bounds = array<i64: 2>, scalar_prefetch = 0 : i64, scratch_operands = 0 : i64, tpu.core_type = #tpu.core_type<tc>, window_params = [{transform_indices = @transform_0, window_bounds = array<i64: 4, 8, 32>}, {transform_indices = @transform_1, window_bounds = array<i64: 4, 1, 8>}, {pipeline_mode = #tpu.pipeline_mode<synchronous>, transform_indices = @transform_2, window_bounds = array<i64: 32, 32>}, {pipeline_mode = #tpu.pipeline_mode<synchronous>, transform_indices = @transform_3, window_bounds = array<i64: 32, 10>}, {transform_indices = @transform_4, window_bounds = array<i64: 4, 1, 320>}, {transform_indices = @transform_5, window_bounds = array<i64: 4, 1, 1>}]} {
    %c0 = arith.constant 0 : index
    %c0_0 = arith.constant 0 : index
    %c0_1 = arith.constant 0 : index
    %0 = vector.load %arg1[%c0, %c0_0, %c0_1] : memref<4x8x32xbf16, #tpu.memory_space<vmem>>, vector<4x8x32xbf16>
    %c0_2 = arith.constant 0 : index
    %c0_3 = arith.constant 0 : index
    %1 = vector.load %arg3[%c0_2, %c0_3] : memref<32x32xbf16, #tpu.memory_space<vmem>>, vector<32x32xbf16>
    %c0_4 = arith.constant 0 : index
    %c0_5 = arith.constant 0 : index
    %2 = vector.load %arg4[%c0_4, %c0_5] : memref<32x10xbf16, #tpu.memory_space<vmem>>, vector<32x10xbf16>
    %3 = vector.shape_cast %0 : vector<4x8x32xbf16> to vector<32x32xbf16>
    %cst = arith.constant dense<0.000000e+00> : vector<32x32xf32>
    %4 = tpu.matmul %3, %1, %cst {dimension_numbers = #tpu.dot_dimension_numbers<[1], [0], [0], [1], [0, 0, 1, 1], [], []>} : vector<32x32xbf16>, vector<32x32xbf16>, vector<32x32xf32> -> vector<32x32xf32>
    %5 = math.tanh %4 : vector<32x32xf32>
    %6 = arith.truncf %5 : vector<32x32xf32> to vector<32x32xbf16>
    %cst_6 = arith.constant dense<0.000000e+00> : vector<32x10xf32>
    %7 = tpu.matmul %6, %2, %cst_6 {dimension_numbers = #tpu.dot_dimension_numbers<[1], [0], [0], [1], [0, 0, 1, 1], [], []>} : vector<32x32xbf16>, vector<32x10xbf16>, vector<32x10xf32> -> vector<32x10xf32>
    %8 = vector.shape_cast %7 : vector<32x10xf32> to vector<4x8x10xf32>
    %9 = tpu.transpose %8, [0, 2, 1] : vector<4x8x10xf32> -> vector<4x10x8xf32>
    %c0_7 = arith.constant 0 : index
    %c0_8 = arith.constant 0 : index
    %c0_9 = arith.constant 0 : index
    %10 = vector.load %arg2[%c0_7, %c0_8, %c0_9] : memref<4x1x8xi32, #tpu.memory_space<vmem>>, vector<4x1x8xi32>
    %c0_i32 = arith.constant 0 : i32
    %11 = vector.broadcast %c0_i32 : i32 to vector<4x1x8xi32>
    %12 = arith.cmpi eq, %10, %11 : vector<4x1x8xi32>
    %cst_10 = arith.constant -9.999990e+05 : f32
    %cst_11 = arith.constant 0.000000e+00 : f32
    %13 = vector.broadcast %cst_10 : f32 to vector<4x1x8xf32>
    %14 = vector.broadcast %cst_11 : f32 to vector<4x1x8xf32>
    %15 = arith.select %12, %13, %14 : vector<4x1x8xi1>, vector<4x1x8xf32>
    %16 = vector.broadcast %15 : vector<4x1x8xf32> to vector<4x10x8xf32>
    %17 = arith.addf %9, %16 : vector<4x10x8xf32>
    %cst_12 = arith.constant dense<0xFF800000> : vector<4x10xf32>
    %18 = vector.multi_reduction <maximumf>, %17, %cst_12 [2] : vector<4x10x8xf32> to vector<4x10xf32>
    %19 = vector.shape_cast %18 : vector<4x10xf32> to vector<4x10x1xf32>
    %20 = vector.broadcast %19 : vector<4x10x1xf32> to vector<4x10x8xf32>
    %21 = arith.subf %17, %20 : vector<4x10x8xf32>
    %22 = math.exp %21 : vector<4x10x8xf32>
    %cst_13 = arith.constant dense<0.000000e+00> : vector<4x10xf32>
    %23 = vector.multi_reduction <add>, %22, %cst_13 [2] : vector<4x10x8xf32> to vector<4x10xf32>
    %24 = vector.shape_cast %23 : vector<4x10xf32> to vector<4x10x1xf32>
    %25 = tpu.reciprocal %24 {approx = true} : vector<4x10x1xf32> -> vector<4x10x1xf32>
    %26 = vector.broadcast %25 : vector<4x10x1xf32> to vector<4x10x8xf32>
    %27 = arith.mulf %22, %26 : vector<4x10x8xf32>
    %28 = arith.truncf %27 : vector<4x10x8xf32> to vector<4x10x8xbf16>
    "tpu.trace_start"() <{level = 10 : i32, message = "bks,bsh->bkh"}> : () -> ()
    %cst_14 = arith.constant dense<0.000000e+00> : vector<4x10x32xf32>
    %29 = tpu.matmul %28, %0, %cst_14 {dimension_numbers = #tpu.dot_dimension_numbers<[2], [1], [1], [2], [0, 0, 0, 1, 1, 2], [0], [0]>} : vector<4x10x8xbf16>, vector<4x8x32xbf16>, vector<4x10x32xf32> -> vector<4x10x32xf32>
    "tpu.trace_stop"() : () -> ()
    %30 = vector.extract_strided_slice %29 {offsets = [0, 0, 0], sizes = [4, 1, 32], strides = [1, 1, 1]} : vector<4x10x32xf32> to vector<4x1x32xf32>
    %c0_15 = arith.constant 0 : index
    %c0_16 = arith.constant 0 : index
    %c0_17 = arith.constant 0 : index
    %31 = vector.load %arg5[%c0_15, %c0_16, %c0_17] : memref<4x1x320xf32, #tpu.memory_space<vmem>>, vector<4x1x32xf32>
    tpu.vector_store %arg5[%c0_15, %c0_16, %c0_17], %30 {strides = array<i32>} : memref<4x1x320xf32, #tpu.memory_space<vmem>>, vector<4x1x32xf32>,
    %32 = vector.extract_strided_slice %29 {offsets = [0, 1, 0], sizes = [4, 1, 32], strides = [1, 1, 1]} : vector<4x10x32xf32> to vector<4x1x32xf32>
    %c0_18 = arith.constant 0 : index
    %c0_19 = arith.constant 0 : index
    %c32 = arith.constant 32 : index
    %33 = vector.load %arg5[%c0_18, %c0_19, %c32] : memref<4x1x320xf32, #tpu.memory_space<vmem>>, vector<4x1x32xf32>
    tpu.vector_store %arg5[%c0_18, %c0_19, %c32], %32 {strides = array<i32>} : memref<4x1x320xf32, #tpu.memory_space<vmem>>, vector<4x1x32xf32>,
    %34 = vector.extract_strided_slice %29 {offsets = [0, 2, 0], sizes = [4, 1, 32], strides = [1, 1, 1]} : vector<4x10x32xf32> to vector<4x1x32xf32>
    %c0_20 = arith.constant 0 : index
    %c0_21 = arith.constant 0 : index
    %c64 = arith.constant 64 : index
    %35 = vector.load %arg5[%c0_20, %c0_21, %c64] : memref<4x1x320xf32, #tpu.memory_space<vmem>>, vector<4x1x32xf32>
    tpu.vector_store %arg5[%c0_20, %c0_21, %c64], %34 {strides = array<i32>} : memref<4x1x320xf32, #tpu.memory_space<vmem>>, vector<4x1x32xf32>,
    %36 = vector.extract_strided_slice %29 {offsets = [0, 3, 0], sizes = [4, 1, 32], strides = [1, 1, 1]} : vector<4x10x32xf32> to vector<4x1x32xf32>
    %c0_22 = arith.constant 0 : index
    %c0_23 = arith.constant 0 : index
    %c96 = arith.constant 96 : index
    %37 = vector.load %arg5[%c0_22, %c0_23, %c96] : memref<4x1x320xf32, #tpu.memory_space<vmem>>, vector<4x1x32xf32>
    tpu.vector_store %arg5[%c0_22, %c0_23, %c96], %36 {strides = array<i32>} : memref<4x1x320xf32, #tpu.memory_space<vmem>>, vector<4x1x32xf32>,
    %38 = vector.extract_strided_slice %29 {offsets = [0, 4, 0], sizes = [4, 1, 32], strides = [1, 1, 1]} : vector<4x10x32xf32> to vector<4x1x32xf32>
    %c0_24 = arith.constant 0 : index
    %c0_25 = arith.constant 0 : index
    %c128 = arith.constant 128 : index
    %39 = vector.load %arg5[%c0_24, %c0_25, %c128] : memref<4x1x320xf32, #tpu.memory_space<vmem>>, vector<4x1x32xf32>
    tpu.vector_store %arg5[%c0_24, %c0_25, %c128], %38 {strides = array<i32>} : memref<4x1x320xf32, #tpu.memory_space<vmem>>, vector<4x1x32xf32>,
    %40 = vector.extract_strided_slice %29 {offsets = [0, 5, 0], sizes = [4, 1, 32], strides = [1, 1, 1]} : vector<4x10x32xf32> to vector<4x1x32xf32>
    %c0_26 = arith.constant 0 : index
    %c0_27 = arith.constant 0 : index
    %c160 = arith.constant 160 : index
    %41 = vector.load %arg5[%c0_26, %c0_27, %c160] : memref<4x1x320xf32, #tpu.memory_space<vmem>>, vector<4x1x32xf32>
    tpu.vector_store %arg5[%c0_26, %c0_27, %c160], %40 {strides = array<i32>} : memref<4x1x320xf32, #tpu.memory_space<vmem>>, vector<4x1x32xf32>,
    %42 = vector.extract_strided_slice %29 {offsets = [0, 6, 0], sizes = [4, 1, 32], strides = [1, 1, 1]} : vector<4x10x32xf32> to vector<4x1x32xf32>
    %c0_28 = arith.constant 0 : index
    %c0_29 = arith.constant 0 : index
    %c192 = arith.constant 192 : index
    %43 = vector.load %arg5[%c0_28, %c0_29, %c192] : memref<4x1x320xf32, #tpu.memory_space<vmem>>, vector<4x1x32xf32>
    tpu.vector_store %arg5[%c0_28, %c0_29, %c192], %42 {strides = array<i32>} : memref<4x1x320xf32, #tpu.memory_space<vmem>>, vector<4x1x32xf32>,
    %44 = vector.extract_strided_slice %29 {offsets = [0, 7, 0], sizes = [4, 1, 32], strides = [1, 1, 1]} : vector<4x10x32xf32> to vector<4x1x32xf32>
    %c0_30 = arith.constant 0 : index
    %c0_31 = arith.constant 0 : index
    %c224 = arith.constant 224 : index
    %45 = vector.load %arg5[%c0_30, %c0_31, %c224] : memref<4x1x320xf32, #tpu.memory_space<vmem>>, vector<4x1x32xf32>
    tpu.vector_store %arg5[%c0_30, %c0_31, %c224], %44 {strides = array<i32>} : memref<4x1x320xf32, #tpu.memory_space<vmem>>, vector<4x1x32xf32>,
    %46 = vector.extract_strided_slice %29 {offsets = [0, 8, 0], sizes = [4, 1, 32], strides = [1, 1, 1]} : vector<4x10x32xf32> to vector<4x1x32xf32>
    %c0_32 = arith.constant 0 : index
    %c0_33 = arith.constant 0 : index
    %c256 = arith.constant 256 : index
    %47 = vector.load %arg5[%c0_32, %c0_33, %c256] : memref<4x1x320xf32, #tpu.memory_space<vmem>>, vector<4x1x32xf32>
    tpu.vector_store %arg5[%c0_32, %c0_33, %c256], %46 {strides = array<i32>} : memref<4x1x320xf32, #tpu.memory_space<vmem>>, vector<4x1x32xf32>,
    %48 = vector.extract_strided_slice %29 {offsets = [0, 9, 0], sizes = [4, 1, 32], strides = [1, 1, 1]} : vector<4x10x32xf32> to vector<4x1x32xf32>
    %c0_34 = arith.constant 0 : index
    %c0_35 = arith.constant 0 : index
    %c288 = arith.constant 288 : index
    %49 = vector.load %arg5[%c0_34, %c0_35, %c288] : memref<4x1x320xf32, #tpu.memory_space<vmem>>, vector<4x1x32xf32>
    tpu.vector_store %arg5[%c0_34, %c0_35, %c288], %48 {strides = array<i32>} : memref<4x1x320xf32, #tpu.memory_space<vmem>>, vector<4x1x32xf32>,
    "tpu.trace_start"() <{level = 10 : i32, message = "bks,bjs->bkj"}> : () -> ()
    %cst_36 = arith.constant dense<0.000000e+00> : vector<4x10x10xf32>
    %50 = tpu.matmul %27, %27, %cst_36 {dimension_numbers = #tpu.dot_dimension_numbers<[2], [2], [1], [1], [0, 0, 0, 1, 1, 1], [0], [0]>} : vector<4x10x8xf32>, vector<4x10x8xf32>, vector<4x10x10xf32> -> vector<4x10x10xf32>
    "tpu.trace_stop"() : () -> ()
    %51 = tpu.iota {dimensions = array<i32: 0>} : vector<10x10xi32>
    %52 = tpu.iota {dimensions = array<i32: 1>} : vector<10x10xi32>
    %53 = arith.cmpi eq, %51, %52 : vector<10x10xi32>
    %54 = arith.extui %53 : vector<10x10xi1> to vector<10x10xi32>
    %55 = arith.sitofp %54 : vector<10x10xi32> to vector<10x10xf32>
    %56 = vector.shape_cast %55 : vector<10x10xf32> to vector<1x10x10xf32>
    %57 = vector.broadcast %56 : vector<1x10x10xf32> to vector<4x10x10xf32>
    %58 = arith.subf %50, %57 : vector<4x10x10xf32>
    %59 = arith.mulf %58, %58 : vector<4x10x10xf32>
    %cst_37 = arith.constant dense<0.000000e+00> : vector<4x10xf32>
    %60 = vector.multi_reduction <add>, %59, %cst_37 [2] : vector<4x10x10xf32> to vector<4x10xf32>
    %61 = vector.shape_cast %60 : vector<4x10xf32> to vector<4x10x1xf32>
    %cst_38 = arith.constant dense<0.000000e+00> : vector<4x1xf32>
    %62 = vector.multi_reduction <add>, %61, %cst_38 [1] : vector<4x10x1xf32> to vector<4x1xf32>
    %63 = vector.shape_cast %62 : vector<4x1xf32> to vector<4x1x1xf32>
    %cst_39 = arith.constant 1.000000e-10 : f32
    %64 = vector.broadcast %cst_39 : f32 to vector<4x1x1xf32>
    %65 = arith.addf %63, %64 : vector<4x1x1xf32>
    %66 = math.sqrt %65 : vector<4x1x1xf32>
    %c0_40 = arith.constant 0 : index
    %c0_41 = arith.constant 0 : index
    %c0_42 = arith.constant 0 : index
    %67 = vector.load %arg6[%c0_40, %c0_41, %c0_42] : memref<4x1x1xf32, #tpu.memory_space<vmem>>, vector<4x1x1xf32>
    tpu.vector_store %arg6[%c0_40, %c0_41, %c0_42], %66 {strides = array<i32>} : memref<4x1x1xf32, #tpu.memory_space<vmem>>, vector<4x1x1xf32>,
    return
  }
  func.func @transform_0(%arg0: i32) -> (i32, i32, i32) {
    %c0_i32 = arith.constant 0 : i32
    %c0_i32_0 = arith.constant 0 : i32
    %c0_i32_1 = arith.constant 0 : i32
    return %arg0, %c0_i32, %c0_i32_0 : i32, i32, i32
  }
  func.func @transform_1(%arg0: i32) -> (i32, i32, i32) {
    %c0_i32 = arith.constant 0 : i32
    %c0_i32_0 = arith.constant 0 : i32
    %c0_i32_1 = arith.constant 0 : i32
    return %arg0, %c0_i32, %c0_i32_0 : i32, i32, i32
  }
  func.func @transform_2(%arg0: i32) -> (i32, i32) {
    %c0_i32 = arith.constant 0 : i32
    %c0_i32_0 = arith.constant 0 : i32
    %c0_i32_1 = arith.constant 0 : i32
    return %c0_i32, %c0_i32_0 : i32, i32
  }
  func.func @transform_3(%arg0: i32) -> (i32, i32) {
    %c0_i32 = arith.constant 0 : i32
    %c0_i32_0 = arith.constant 0 : i32
    %c0_i32_1 = arith.constant 0 : i32
    return %c0_i32, %c0_i32_0 : i32, i32
  }
  func.func @transform_4(%arg0: i32) -> (i32, i32, i32) {
    %c0_i32 = arith.constant 0 : i32
    %c0_i32_0 = arith.constant 0 : i32
    %c0_i32_1 = arith.constant 0 : i32
    return %arg0, %c0_i32, %c0_i32_0 : i32, i32, i32
  }
  func.func @transform_5(%arg0: i32) -> (i32, i32, i32) {
    %c0_i32 = arith.constant 0 : i32
    %c0_i32_0 = arith.constant 0 : i32
    %c0_i32_1 = arith.constant 0 : i32
    return %arg0, %c0_i32, %c0_i32_0 : i32, i32, i32
  }
}

</mosaic_0001>

<llo_original>
// kernel: tpu_custom_call.1
$region0: #{tpu_custom_call.1}
  #allocation0 [shape = 'u32[]', space=smem, size = 0x4, offset = 0x4, fixed_abs, tag = 'smem constant byte address 0x4 - core index']
  #allocation1 [shape = 'u32[144,128]{1,0:T(1,128)}', space=vmem, size = 0x12000, scoped, tag = 'internal scratch']
  %s0 = inlined_call_operand.hbm [shape: bf16[8,8,32], index: 0, kind: input, shape index: {}]
  %s1 = inlined_call_operand.vmem [shape: s32[8,1,8], index: 1, kind: input, shape index: {}]
  %s2 = inlined_call_operand.vmem [shape: bf16[32,32], index: 2, kind: input, shape index: {}]
  %s3 = inlined_call_operand.vmem [shape: bf16[32,10], index: 3, kind: input, shape index: {}]
  %s4 = inlined_call_operand.hbm [shape: f32[8,1,320], index: 4, kind: output, shape index: {0}]
  %s5 = inlined_call_operand.vmem [shape: f32[8,1,1], index: 5, kind: output, shape index: {1}]
  %6 = xla_tuple %s4, %s5
  %s7 = sld [smem:[#allocation0]]
  $region61: #{tpu_custom_call.1} parent=0
    _
  %s9 = ssub.s32 1, %s7
  %s10 = scalar_select 0, %s9, %s7
  $region1: #{tpu_custom_call.1} parent=0
    #allocation2 [shape = 'u8[16384]{0}', space=vmem, size = 0x4000, scoped, tag = 'input window, operand 0']
    #allocation3 [shape = 's32[2]{0}', space=sflag, size = 0x8, scoped, tag = 'scoped memory for tpu_custom_call.1']
    #allocation4 [shape = 's32[2]{0}', space=sflag, size = 0x8, scoped, tag = 'scoped memory for tpu_custom_call.1']
    #allocation5 [shape = 'u8[12288]{0}', space=vmem, size = 0x3000, scoped, tag = 'output window, operand 0']
    %11 = vsyncpa [#allocation3], 0
    %s12 = scalar_lea.sflag [#allocation3], 1
    %13 = vsyncpa %s12, 0
    %14 = vsyncpa [#allocation4], 0
    %s15 = scalar_lea.sflag [#allocation4], 1
    %16 = vsyncpa %s15, 0
    loop: start=0, step=1, limit=4
    $region2: #{tpu_custom_call.1} parent=1 // loop_pre_header
      _
    $region3: #{tpu_custom_call.1} parent=1 // loop_header
      %s18 = sphi 0, %s22
      %p19 = scmp.ge.s32.totalorder %s18, 4
      %s28 = sphi 0, %s30
      %s31 = sphi 0, %s28
      %s32 = sphi 0, %s31
      %s48 = sphi 0, %s32
      %s54 = sphi 0, %s56
      %s57 = sphi 0, %s54
      %s58 = sphi 0, %s57
      %s74 = sphi 0, %s58
      %s78 = sphi 0, %s78
      %s80 = sphi 0, %s78
      %s81 = sphi 0, %s80
      %s95 = sphi 0, %s81
      %s99 = sphi 0, %s99
      %s101 = sphi 0, %s99
      %s102 = sphi 0, %s101
      %s116 = sphi 0, %s102
      %s122 = sphi 0, %s124
      %s125 = sphi 0, %s122
      %s126 = sphi 0, %s125
      %s142 = sphi 0, %s126
      %s148 = sphi 0, %s150
      %s151 = sphi 0, %s148
      %s152 = sphi 0, %s151
      %s168 = sphi 0, %s152
    $region4: #{tpu_custom_call.1} parent=1 // loop_header_branch
      %21 = sbr.rel (%p19) target = $region8
    $region5: #{tpu_custom_call.1} parent=1 // loop_body
      %s23 = ssub.s32 %s18, 1
      %s24 = ssub.s32 %s18, 2
      %s25 = sadd.s32 %s18, 1
      %s26 = ssub.s32 %s18, %s25
      %p27 = scmp.eq.s32.totalorder %s26, 0
      %s29 = sadd.s32 %s28, 1
      %s30 = scalar_select %p27, %s28, %s29
      %p33 = pneg %p27
      %p34 = scmp.eq.s32.totalorder %s18, 1
      %p35 = por %p33, %p34
      %p36 = scmp.ne.s32.totalorder %s28, %s31
      %p37 = scmp.eq.s32.totalorder %s18, 0
      %p38 = por %p36, %p37
      %p39 = scmp.ne.s32.totalorder %s28, %s31
      %p40 = scmp.eq.s32.totalorder %s23, 1
      %p41 = por %p39, %p40
      %p42 = scmp.ne.s32.totalorder %s31, %s32
      %p43 = scmp.eq.s32.totalorder %s23, 0
      %p44 = por %p42, %p43
      %p45 = scmp.ne.s32.totalorder %s31, %s32
      %p46 = scmp.eq.s32.totalorder %s24, 1
      %p47 = por %p45, %p46
      %p49 = scmp.ne.s32.totalorder %s32, %s48
      %p50 = scmp.eq.s32.totalorder %s24, 0
      %p51 = por %p49, %p50
      %s52 = ssub.s32 %s18, %s25
      %p53 = scmp.eq.s32.totalorder %s52, 0
      %s55 = sadd.s32 %s54, 1
      %s56 = scalar_select %p53, %s54, %s55
      %p59 = pneg %p53
      %p60 = scmp.eq.s32.totalorder %s18, 1
      %p61 = por %p59, %p60
      %p62 = scmp.ne.s32.totalorder %s54, %s57
      %p63 = scmp.eq.s32.totalorder %s18, 0
      %p64 = por %p62, %p63
      %p65 = scmp.ne.s32.totalorder %s54, %s57
      %p66 = scmp.eq.s32.totalorder %s23, 1
      %p67 = por %p65, %p66
      %p68 = scmp.ne.s32.totalorder %s57, %s58
      %p69 = scmp.eq.s32.totalorder %s23, 0
      %p70 = por %p68, %p69
      %p71 = scmp.ne.s32.totalorder %s57, %s58
      %p72 = scmp.eq.s32.totalorder %s24, 1
      %p73 = por %p71, %p72
      %p75 = scmp.ne.s32.totalorder %s58, %s74
      %p76 = scmp.eq.s32.totalorder %s24, 0
      %p77 = por %p75, %p76
      %s79 = sadd.s32 %s78, 1
      %p82 = scmp.eq.s32.totalorder %s18, 1
      %p83 = scmp.ne.s32.totalorder %s78, %s80
      %p84 = scmp.eq.s32.totalorder %s18, 0
      %p85 = por %p83, %p84
      %p86 = scmp.ne.s32.totalorder %s78, %s80
      %p87 = scmp.eq.s32.totalorder %s23, 1
      %p88 = por %p86, %p87
      %p89 = scmp.ne.s32.totalorder %s80, %s81
      %p90 = scmp.eq.s32.totalorder %s23, 0
      %p91 = por %p89, %p90
      %p92 = scmp.ne.s32.totalorder %s80, %s81
      %p93 = scmp.eq.s32.totalorder %s24, 1
      %p94 = por %p92, %p93
      %p96 = scmp.ne.s32.totalorder %s81, %s95
      %p97 = scmp.eq.s32.totalorder %s24, 0
      %p98 = por %p96, %p97
      %s100 = sadd.s32 %s99, 1
      %p103 = scmp.eq.s32.totalorder %s18, 1
      %p104 = scmp.ne.s32.totalorder %s99, %s101
      %p105 = scmp.eq.s32.totalorder %s18, 0
      %p106 = por %p104, %p105
      %p107 = scmp.ne.s32.totalorder %s99, %s101
      %p108 = scmp.eq.s32.totalorder %s23, 1
      %p109 = por %p107, %p108
      %p110 = scmp.ne.s32.totalorder %s101, %s102
      %p111 = scmp.eq.s32.totalorder %s23, 0
      %p112 = por %p110, %p111
      %p113 = scmp.ne.s32.totalorder %s101, %s102
      %p114 = scmp.eq.s32.totalorder %s24, 1
      %p115 = por %p113, %p114
      %p117 = scmp.ne.s32.totalorder %s102, %s116
      %p118 = scmp.eq.s32.totalorder %s24, 0
      %p119 = por %p117, %p118
      %s120 = ssub.s32 %s18, %s25
      %p121 = scmp.eq.s32.totalorder %s120, 0
      %s123 = sadd.s32 %s122, 1
      %s124 = scalar_select %p121, %s122, %s123
      %p127 = pneg %p121
      %p128 = scmp.eq.s32.totalorder %s18, 1
      %p129 = por %p127, %p128
      %p130 = scmp.ne.s32.totalorder %s122, %s125
      %p131 = scmp.eq.s32.totalorder %s18, 0
      %p132 = por %p130, %p131
      %p133 = scmp.ne.s32.totalorder %s122, %s125
      %p134 = scmp.eq.s32.totalorder %s23, 1
      %p135 = por %p133, %p134
      %p136 = scmp.ne.s32.totalorder %s125, %s126
      %p137 = scmp.eq.s32.totalorder %s23, 0
      %p138 = por %p136, %p137
      %p139 = scmp.ne.s32.totalorder %s125, %s126
      %p140 = scmp.eq.s32.totalorder %s24, 1
      %p141 = por %p139, %p140
      %p143 = scmp.ne.s32.totalorder %s126, %s142
      %p144 = scmp.eq.s32.totalorder %s24, 0
      %p145 = por %p143, %p144
      %s146 = ssub.s32 %s18, %s25
      %p147 = scmp.eq.s32.totalorder %s146, 0
      %s149 = sadd.s32 %s148, 1
      %s150 = scalar_select %p147, %s148, %s149
      %p153 = pneg %p147
      %p154 = scmp.eq.s32.totalorder %s18, 1
      %p155 = por %p153, %p154
      %p156 = scmp.ne.s32.totalorder %s148, %s151
      %p157 = scmp.eq.s32.totalorder %s18, 0
      %p158 = por %p156, %p157
      %p159 = scmp.ne.s32.totalorder %s148, %s151
      %p160 = scmp.eq.s32.totalorder %s23, 1
      %p161 = por %p159, %p160
      %p162 = scmp.ne.s32.totalorder %s151, %s152
      %p163 = scmp.eq.s32.totalorder %s23, 0
      %p164 = por %p162, %p163
      %p165 = scmp.ne.s32.totalorder %s151, %s152
      %p166 = scmp.eq.s32.totalorder %s24, 1
      %p167 = por %p165, %p166
      %p169 = scmp.ne.s32.totalorder %s152, %s168
      %p170 = scmp.eq.s32.totalorder %s24, 0
      %p171 = por %p169, %p170
      %p172 = scmp.le.s32.totalorder 1, %s18
      %p173 = scmp.lt.s32.totalorder %s18, 3
      %p174 = pnand %p172, %p173
      %p175 = pneg %p174
      // Predicated region
      $region9: #{tpu_custom_call.1} parent=5 // pred_check
        _
      $region10: #{tpu_custom_call.1} parent=5 // pred_check_branch
        %177 = sbr.rel (%p174) target = $region12
      $region11: #{tpu_custom_call.1} parent=5 // pred_region
        %s178 = ssub.s32 %s18, 1
        // Predicated region
        $region13: #{tpu_custom_call.1} parent=11 // pred_check
          %p179 = pneg %p91
        $region14: #{tpu_custom_call.1} parent=11 // pred_check_branch
          %181 = sbr.rel (%p179) target = $region16
        $region15: #{tpu_custom_call.1} parent=11 // pred_region
          _
        $region16: #{tpu_custom_call.1} parent=11 // pred_fallthru
          _
        // Predicated region
        $region17: #{tpu_custom_call.1} parent=11 // pred_check
          %p182 = pneg %p112
        $region18: #{tpu_custom_call.1} parent=11 // pred_check_branch
          %184 = sbr.rel (%p182) target = $region20
        $region19: #{tpu_custom_call.1} parent=11 // pred_region
          _
        $region20: #{tpu_custom_call.1} parent=11 // pred_fallthru
          _
      $region12: #{tpu_custom_call.1} parent=5 // pred_fallthru
        _
      %p185 = scmp.lt.s32.totalorder %s18, 2
      // Predicated region
      $region21: #{tpu_custom_call.1} parent=5 // pred_check
        %p186 = pneg %p185
      $region22: #{tpu_custom_call.1} parent=5 // pred_check_branch
        %188 = sbr.rel (%p186) target = $region24
      $region23: #{tpu_custom_call.1} parent=5 // pred_region
        // Predicated region
        $region25: #{tpu_custom_call.1} parent=23 // pred_check
          %p189 = pneg %p38
        $region26: #{tpu_custom_call.1} parent=23 // pred_check_branch
          %191 = sbr.rel (%p189) target = $region28
        $region27: #{tpu_custom_call.1} parent=23 // pred_region
          %s192 = sand.u32 %s28, 1
          %s193 = scalar_lea.sflag [#allocation3], %s192
          %s194 = sand.u32 %s28, 1
          %s195 = smul.addr %s194, 16
          %s196 = scalar_lea.vmem [#allocation2], %s195
          %s197 = smul.u32 4, %s18
          %s199 = ssub.s32 256, 256
          %200 = vsyncadd %s193, %s199
          %s201 = smul.addr %s197, 64
          %s202 = scalar_lea.hbm %s0, %s201
          %s203 = sshll.u32 %s196, 4
          %s204 = int_to_ptr.vmem [resolvable:$true] %s203
          %209 = dma.hbm_to_vmem [thread:$0]  %s202, 256, %s204, %s193, 64, 64, 4
        $region28: #{tpu_custom_call.1} parent=23 // pred_fallthru
          _
        // Predicated region
        $region29: #{tpu_custom_call.1} parent=23 // pred_check
          %p210 = pneg %p64
        $region30: #{tpu_custom_call.1} parent=23 // pred_check_branch
          %212 = sbr.rel (%p210) target = $region32
        $region31: #{tpu_custom_call.1} parent=23 // pred_region
          %s213 = smul.u32 4, %s18
          %p214 = scmp.lt.s32.totalorder %s213, 7
          %s215 = scalar_select %p214, %s213, 7
          %s216 = scalar_lea.vmem %s1, %s215
          %s217 = smul.u32 4, %s18
        $region32: #{tpu_custom_call.1} parent=23 // pred_fallthru
          _
      $region24: #{tpu_custom_call.1} parent=5 // pred_fallthru
        _
      %p218 = scmp.le.s32.totalorder 1, %s18
      %p219 = scmp.lt.s32.totalorder %s18, 3
      %p220 = pnand %p218, %p219
      %p221 = pneg %p220
      // Predicated region
      $region33: #{tpu_custom_call.1} parent=5 // pred_check
        _
      $region34: #{tpu_custom_call.1} parent=5 // pred_check_branch
        %223 = sbr.rel (%p220) target = $region36
      $region35: #{tpu_custom_call.1} parent=5 // pred_region
        %s224 = ssub.s32 %s18, 1
        %s225 = sand.u32 %s31, 1
        %s226 = scalar_lea.sflag [#allocation3], %s225
        %s227 = sand.u32 %s31, 1
        %s228 = smul.addr %s227, 16
        %s229 = scalar_lea.vmem [#allocation2], %s228
        // Predicated region
        $region37: #{tpu_custom_call.1} parent=35 // pred_check
          %p230 = pneg %p44
        $region38: #{tpu_custom_call.1} parent=35 // pred_check_branch
          %232 = sbr.rel (%p230) target = $region40
        $region39: #{tpu_custom_call.1} parent=35 // pred_region
          %233 = dma.done %s226, 256
        $region40: #{tpu_custom_call.1} parent=35 // pred_fallthru
          _
        %s234 = sand.u32 %s31, 1
        %s235 = scalar_lea.sflag [#allocation3], %s234
        %s236 = sand.u32 %s31, 1
        %s237 = smul.addr %s236, 16
        %s238 = scalar_lea.vmem [#allocation2], %s237
        %p239 = pneg %p44
        %p240 = pneg %p41
        %s241 = smul.u32 4, %s23
        %p242 = scmp.lt.s32.totalorder %s241, 7
        %s243 = scalar_select %p242, %s241, 7
        %s244 = scalar_lea.vmem %s1, %s243
        %p245 = pneg %p70
        %p246 = pneg %p67
        %p247 = pneg %p91
        %p248 = pneg %p88
        %p249 = pneg %p112
        %p250 = pneg %p109
        %p251 = pneg %p138
        %p252 = pneg %p135
        %s253 = sand.u32 %s125, 1
        %s254 = scalar_lea.sflag [#allocation4], %s253
        %s255 = sand.u32 %s125, 1
        %s256 = smul.addr %s255, 12
        %s257 = scalar_lea.vmem [#allocation5], %s256
        %p258 = pneg %p164
        %p259 = pneg %p161
        %s260 = smul.u32 4, %s23
        %p261 = scmp.lt.s32.totalorder %s260, 7
        %s262 = scalar_select %p261, %s260, 7
        %s263 = scalar_lea.vmem %s5, %s262
        %s264 = smul.u32 4, %s23
        %s265 = smul.u32 4, %s23
        %p266 = scmp.lt.s32.totalorder %s265, 7
        %s267 = scalar_select %p266, %s265, 7
        %s268 = scalar_lea.vmem %s1, %s267
        %s269 = smul.u32 4, %s23
        %s270 = smul.u32 4, %s23
        %s271 = smul.u32 4, %s23
        %p272 = scmp.lt.s32.totalorder %s271, 7
        %s273 = scalar_select %p272, %s271, 7
        %s274 = scalar_lea.vmem %s5, %s273
        %s275 = smul.u32 4, %s23
        %v277 = vld [vmem:[%s229] sm:$0xf]
        %v278 = vld [vmem:[%s229 + $0x4] sm:$0xf]
        %v279 = vld [vmem:[%s229 + $0x8] sm:$0xf]
        %v280 = vld [vmem:[%s229 + $0xc] sm:$0xf]
        %v281 = vld [vmem:[%s2] sm:$0xf]
        %v282 = vld [vmem:[%s2 + $0x4] sm:$0xf]
        %v283 = vld [vmem:[%s2 + $0x8] sm:$0xf]
        %v284 = vld [vmem:[%s2 + $0xc] sm:$0xf]
        %v285 = vld [vmem:[%s3] sm:$0xf]
        %v286 = vld [vmem:[%s3 + $0x4] sm:$0xf]
        %v287 = vld [vmem:[%s3 + $0x8] sm:$0xf]
        %v288 = vld [vmem:[%s3 + $0xc] sm:$0xf]
        %v293 = vunpack.c.l.b16 %v277
        %v294 = vunpack.c.l.b16 %v278
        %v295 = vunpack.c.l.b16 %v279
        %v296 = vunpack.c.l.b16 %v280
        %v297 = vpack.c.b16 %v294, %v293
        %v298 = vpack.c.b16 %v296, %v295
        %v303 = vunpack.c.l.b16 %v281
        %v304 = vunpack.c.l.b16 %v282
        %v305 = vunpack.c.l.b16 %v283
        %v306 = vunpack.c.l.b16 %v284
        %v307 = vpack.c.b16 %v304, %v303
        %v308 = vpack.c.b16 %v306, %v305
        %vm311 = vcmask 261120
        %v313 = vsel %vm311, %v297, 0
        %v316 = vsel %vm311, %v298, 0
        %318 = vmatprep.subr.bf16.mxu0 0
        %319 = vmatpush1.bf16.msra.mxu0 0
        %320 = vmatprep.subr.bf16.mxu0 0
        %321 = vmatpush1.bf16.msra.mxu0 0
        %322 = vmatprep.subr.bf16.mxu0 0
        %323 = vmatpush1.bf16.msra.mxu0 0
        %324 = vmatprep.subr.bf16.mxu0 0
        %325 = vmatpush1.bf16.msra.mxu0 0
        %326 = vmatprep.subr.bf16.mxu0 0
        %327 = vmatpush1.bf16.msra.mxu0 0
        %328 = vmatprep.subr.bf16.mxu0 0
        %329 = vmatpush1.bf16.msra.mxu0 0
        %330 = vmatprep.subr.bf16.mxu0 0
        %331 = vmatpush1.bf16.msra.mxu0 %v308
        %332 = vmatprep.subr.bf16.mxu0 0
        %333 = vmatpush1.bf16.msra.mxu0 %v307
        %334 = vmatprep.subr.bf16.mxu0 0
        %335 = vmatpush2.bf16.msra.mxu0 0
        %336 = vmatprep.subr.bf16.mxu0 0
        %337 = vmatpush2.bf16.msra.mxu0 0
        %338 = vmatprep.subr.bf16.mxu0 0
        %339 = vmatpush2.bf16.msra.mxu0 0
        %340 = vmatprep.subr.bf16.mxu0 0
        %341 = vmatpush2.bf16.msra.mxu0 0
        %342 = vmatprep.subr.bf16.mxu0 0
        %343 = vmatpush2.bf16.msra.mxu0 0
        %344 = vmatprep.subr.bf16.mxu0 0
        %345 = vmatpush2.bf16.msra.mxu0 0
        %346 = vmatprep.subr.bf16.mxu0 0
        %347 = vmatpush2.bf16.msra.mxu0 0
        %348 = vmatprep.subr.bf16.mxu0 0
        %349 = vmatpush2.bf16.msra.mxu0 0
        %350 = vmatprep.mubr.bf16.mxu0 0
        %351 = vmatmul.mubr.bf16.gmra.mxu0 %v313
        %v352 = vpop.f32.mrf.mxu0
        %v353 = vadd.f32 0.0, %v352
        %v354 = vpop.f32.mrf.mxu0
        %v355 = vpop.f32.mrf.mxu0
        %v356 = vadd.f32 0.0, %v355
        %v357 = vpop.f32.mrf.mxu0
        %358 = vmatprep.mubr.bf16.mxu0 0
        %359 = vmatmul.mubr.bf16.gmra.mxu0 %v316
        %v360 = vpop.f32.mrf.mxu0
        %v361 = vadd.f32 0.0, %v360
        %v362 = vpop.f32.mrf.mxu0
        %v363 = vpop.f32.mrf.mxu0
        %v364 = vadd.f32 0.0, %v363
        %v365 = vpop.f32.mrf.mxu0
        %366 = vdwg.mxu0
        %v367 = vtanh.pop %v353
        %v368 = vtanh.pop %v356
        %v369 = vtanh.pop %v361
        %v370 = vtanh.pop %v364
        %v371 = vpack.c.bf16 %v368, %v367
        %v372 = vpack.c.bf16 %v370, %v369
        %v377 = vunpack.c.l.b16 %v285
        %v378 = vunpack.c.l.b16 %v286
        %v379 = vunpack.c.l.b16 %v287
        %v380 = vunpack.c.l.b16 %v288
        %v381 = vpack.c.b16 %v378, %v377
        %v382 = vpack.c.b16 %v380, %v379
        %v386 = vsel %vm311, %v371, 0
        %v389 = vsel %vm311, %v372, 0
        %391 = vmatprep.subr.bf16.mxu0 0
        %392 = vmatpush1.bf16.msra.mxu0 0
        %393 = vmatprep.subr.bf16.mxu0 0
        %394 = vmatpush1.bf16.msra.mxu0 0
        %395 = vmatprep.subr.bf16.mxu0 0
        %396 = vmatpush1.bf16.msra.mxu0 0
        %397 = vmatprep.subr.bf16.mxu0 0
        %398 = vmatpush1.bf16.msra.mxu0 0
        %399 = vmatprep.subr.bf16.mxu0 0
        %400 = vmatpush1.bf16.msra.mxu0 0
        %401 = vmatprep.subr.bf16.mxu0 0
        %402 = vmatpush1.bf16.msra.mxu0 0
        %403 = vmatprep.subr.bf16.mxu0 0
        %404 = vmatpush1.bf16.msra.mxu0 %v382
        %405 = vmatprep.subr.bf16.mxu0 0
        %406 = vmatpush1.bf16.msra.mxu0 %v381
        %407 = vmatprep.subr.bf16.mxu0 0
        %408 = vmatpush2.bf16.msra.mxu0 0
        %409 = vmatprep.subr.bf16.mxu0 0
        %410 = vmatpush2.bf16.msra.mxu0 0
        %411 = vmatprep.subr.bf16.mxu0 0
        %412 = vmatpush2.bf16.msra.mxu0 0
        %413 = vmatprep.subr.bf16.mxu0 0
        %414 = vmatpush2.bf16.msra.mxu0 0
        %415 = vmatprep.subr.bf16.mxu0 0
        %416 = vmatpush2.bf16.msra.mxu0 0
        %417 = vmatprep.subr.bf16.mxu0 0
        %418 = vmatpush2.bf16.msra.mxu0 0
        %419 = vmatprep.subr.bf16.mxu0 0
        %420 = vmatpush2.bf16.msra.mxu0 0
        %421 = vmatprep.subr.bf16.mxu0 0
        %422 = vmatpush2.bf16.msra.mxu0 0
        %423 = vmatprep.mubr.bf16.mxu0 0
        %424 = vmatmul.mubr.bf16.gmra.mxu0 %v386
        %v425 = vpop.f32.mrf.mxu0
        %v426 = vadd.f32 0.0, %v425
        %v427 = vpop.f32.mrf.mxu0
        %v428 = vpop.f32.mrf.mxu0
        %v429 = vadd.f32 0.0, %v428
        %v430 = vpop.f32.mrf.mxu0
        %431 = vmatprep.mubr.bf16.mxu0 0
        %432 = vmatmul.mubr.bf16.gmra.mxu0 %v389
        %v433 = vpop.f32.mrf.mxu0
        %v434 = vadd.f32 0.0, %v433
        %v435 = vpop.f32.mrf.mxu0
        %v436 = vpop.f32.mrf.mxu0
        %v437 = vadd.f32 0.0, %v436
        %v438 = vpop.f32.mrf.mxu0
        %439 = vdwg.mxu0
        %440 = vxpose.xlu0.b32.start [1/16] %v426, 128
        %441 = vxpose.xlu0.b32.cont [2/16] 0.0, 128
        %442 = vxpose.xlu0.b32.cont [3/16] 0.0, 128
        %443 = vxpose.xlu0.b32.cont [4/16] 0.0, 128
        %444 = vxpose.xlu0.b32.cont [5/16] 0.0, 128
        %445 = vxpose.xlu0.b32.cont [6/16] 0.0, 128
        %446 = vxpose.xlu0.b32.cont [7/16] 0.0, 128
        %447 = vxpose.xlu0.b32.cont [8/16] 0.0, 128
        %448 = vxpose.xlu0.b32.cont [9/16] 0.0, 128
        %449 = vxpose.xlu0.b32.cont [10/16] 0.0, 128
        %450 = vxpose.xlu0.b32.cont [11/16] 0.0, 128
        %451 = vxpose.xlu0.b32.cont [12/16] 0.0, 128
        %452 = vxpose.xlu0.b32.cont [13/16] 0.0, 128
        %453 = vxpose.xlu0.b32.cont [14/16] 0.0, 128
        %454 = vxpose.xlu0.b32.cont [15/16] 0.0, 128
        %455 = vxpose.xlu0.b32.end [16/16] 0.0, 128
        %v456 = vpop.trf.xlu0
        %v457 = vpop.trf.xlu0
        %v458 = vpop.trf.xlu0
        %v459 = vpop.trf.xlu0
        %v460 = vpop.trf.xlu0
        %v461 = vpop.trf.xlu0
        %v462 = vpop.trf.xlu0
        %v463 = vpop.trf.xlu0
        %v464 = vpop.trf.xlu0
        %v465 = vpop.trf.xlu0
        %v466 = vpop.trf.xlu0
        %v467 = vpop.trf.xlu0
        %v468 = vpop.trf.xlu0
        %v469 = vpop.trf.xlu0
        %v470 = vpop.trf.xlu0
        %v471 = vpop.trf.xlu0
        %472 = vxpose.xlu0.b32.start [1/16] %v429, 128
        %473 = vxpose.xlu0.b32.cont [2/16] 0.0, 128
        %474 = vxpose.xlu0.b32.cont [3/16] 0.0, 128
        %475 = vxpose.xlu0.b32.cont [4/16] 0.0, 128
        %476 = vxpose.xlu0.b32.cont [5/16] 0.0, 128
        %477 = vxpose.xlu0.b32.cont [6/16] 0.0, 128
        %478 = vxpose.xlu0.b32.cont [7/16] 0.0, 128
        %479 = vxpose.xlu0.b32.cont [8/16] 0.0, 128
        %480 = vxpose.xlu0.b32.cont [9/16] 0.0, 128
        %481 = vxpose.xlu0.b32.cont [10/16] 0.0, 128
        %482 = vxpose.xlu0.b32.cont [11/16] 0.0, 128
        %483 = vxpose.xlu0.b32.cont [12/16] 0.0, 128
        %484 = vxpose.xlu0.b32.cont [13/16] 0.0, 128
        %485 = vxpose.xlu0.b32.cont [14/16] 0.0, 128
        %486 = vxpose.xlu0.b32.cont [15/16] 0.0, 128
        %487 = vxpose.xlu0.b32.end [16/16] 0.0, 128
        %v488 = vpop.trf.xlu0
        %v489 = vpop.trf.xlu0
        %v490 = vpop.trf.xlu0
        %v491 = vpop.trf.xlu0
        %v492 = vpop.trf.xlu0
        %v493 = vpop.trf.xlu0
        %v494 = vpop.trf.xlu0
        %v495 = vpop.trf.xlu0
        %v496 = vpop.trf.xlu0
        %v497 = vpop.trf.xlu0
        %v498 = vpop.trf.xlu0
        %v499 = vpop.trf.xlu0
        %v500 = vpop.trf.xlu0
        %v501 = vpop.trf.xlu0
        %v502 = vpop.trf.xlu0
        %v503 = vpop.trf.xlu0
        %504 = vxpose.xlu0.b32.start [1/16] %v434, 128
        %505 = vxpose.xlu0.b32.cont [2/16] 0.0, 128
        %506 = vxpose.xlu0.b32.cont [3/16] 0.0, 128
        %507 = vxpose.xlu0.b32.cont [4/16] 0.0, 128
        %508 = vxpose.xlu0.b32.cont [5/16] 0.0, 128
        %509 = vxpose.xlu0.b32.cont [6/16] 0.0, 128
        %510 = vxpose.xlu0.b32.cont [7/16] 0.0, 128
        %511 = vxpose.xlu0.b32.cont [8/16] 0.0, 128
        %512 = vxpose.xlu0.b32.cont [9/16] 0.0, 128
        %513 = vxpose.xlu0.b32.cont [10/16] 0.0, 128
        %514 = vxpose.xlu0.b32.cont [11/16] 0.0, 128
        %515 = vxpose.xlu0.b32.cont [12/16] 0.0, 128
        %516 = vxpose.xlu0.b32.cont [13/16] 0.0, 128
        %517 = vxpose.xlu0.b32.cont [14/16] 0.0, 128
        %518 = vxpose.xlu0.b32.cont [15/16] 0.0, 128
        %519 = vxpose.xlu0.b32.end [16/16] 0.0, 128
        %v520 = vpop.trf.xlu0
        %v521 = vpop.trf.xlu0
        %v522 = vpop.trf.xlu0
        %v523 = vpop.trf.xlu0
        %v524 = vpop.trf.xlu0
        %v525 = vpop.trf.xlu0
        %v526 = vpop.trf.xlu0
        %v527 = vpop.trf.xlu0
        %v528 = vpop.trf.xlu0
        %v529 = vpop.trf.xlu0
        %v530 = vpop.trf.xlu0
        %v531 = vpop.trf.xlu0
        %v532 = vpop.trf.xlu0
        %v533 = vpop.trf.xlu0
        %v534 = vpop.trf.xlu0
        %v535 = vpop.trf.xlu0
        %536 = vxpose.xlu0.b32.start [1/16] %v437, 128
        %537 = vxpose.xlu0.b32.cont [2/16] 0.0, 128
        %538 = vxpose.xlu0.b32.cont [3/16] 0.0, 128
        %539 = vxpose.xlu0.b32.cont [4/16] 0.0, 128
        %540 = vxpose.xlu0.b32.cont [5/16] 0.0, 128
        %541 = vxpose.xlu0.b32.cont [6/16] 0.0, 128
        %542 = vxpose.xlu0.b32.cont [7/16] 0.0, 128
        %543 = vxpose.xlu0.b32.cont [8/16] 0.0, 128
        %544 = vxpose.xlu0.b32.cont [9/16] 0.0, 128
        %545 = vxpose.xlu0.b32.cont [10/16] 0.0, 128
        %546 = vxpose.xlu0.b32.cont [11/16] 0.0, 128
        %547 = vxpose.xlu0.b32.cont [12/16] 0.0, 128
        %548 = vxpose.xlu0.b32.cont [13/16] 0.0, 128
        %549 = vxpose.xlu0.b32.cont [14/16] 0.0, 128
        %550 = vxpose.xlu0.b32.cont [15/16] 0.0, 128
        %551 = vxpose.xlu0.b32.end [16/16] 0.0, 128
        %v552 = vpop.trf.xlu0
        %v553 = vpop.trf.xlu0
        %v554 = vpop.trf.xlu0
        %v555 = vpop.trf.xlu0
        %v556 = vpop.trf.xlu0
        %v557 = vpop.trf.xlu0
        %v558 = vpop.trf.xlu0
        %v559 = vpop.trf.xlu0
        %v560 = vpop.trf.xlu0
        %v561 = vpop.trf.xlu0
        %v562 = vpop.trf.xlu0
        %v563 = vpop.trf.xlu0
        %v564 = vpop.trf.xlu0
        %v565 = vpop.trf.xlu0
        %v566 = vpop.trf.xlu0
        %v567 = vpop.trf.xlu0
        %v568 = vld [vmem:[%s268] sm:$0x1]
        %v569 = vld [vmem:[%s268 + $0x1] sm:$0x1]
        %v570 = vld [vmem:[%s268 + $0x2] sm:$0x1]
        %v571 = vld [vmem:[%s268 + $0x3] sm:$0x1]
        %vm572 = vcmp.eq.s32.totalorder %v568, 0
        %vm573 = vcmp.eq.s32.totalorder %v569, 0
        %vm574 = vcmp.eq.s32.totalorder %v570, 0
        %vm575 = vcmp.eq.s32.totalorder %v571, 0
        %v576 = vsel %vm572, -999999.0, 0.0
        %v577 = vsel %vm573, -999999.0, 0.0
        %v578 = vsel %vm574, -999999.0, 0.0
        %v579 = vsel %vm575, -999999.0, 0.0
        %v584 = vlaneseq
        %v585 = vshrl.u32 %v584, 7
        %v586 = vsub.s32 0, %v585
        %v587 = vrot.slane %v576, %v586
        %v588 = vlaneseq
        %v589 = vshrl.u32 %v588, 7
        %v590 = vsub.s32 0, %v589
        %v591 = vrot.slane %v577, %v590
        %v592 = vlaneseq
        %v593 = vshrl.u32 %v592, 7
        %v594 = vsub.s32 0, %v593
        %v595 = vrot.slane %v578, %v594
        %v596 = vlaneseq
        %v597 = vshrl.u32 %v596, 7
        %v598 = vsub.s32 0, %v597
        %v599 = vrot.slane %v579, %v598
        %v604 = vadd.f32 %v456, %v587
        %v605 = vadd.f32 %v457, %v587
        %v606 = vadd.f32 %v488, %v591
        %v607 = vadd.f32 %v489, %v591
        %v608 = vadd.f32 %v520, %v595
        %v609 = vadd.f32 %v521, %v595
        %v610 = vadd.f32 %v552, %v599
        %v611 = vadd.f32 %v553, %v599
        %vm612 = vcmask 64512
        %v613 = vsel %vm612, %v604, -inf
        %614 = vmax.xlane.f32.xlu0 %v613
        %v615 = vpop.xlane.xlu0 %614
        %vm616 = vcmask 58368
        %v617 = vsel %vm616, %v605, -inf
        %618 = vmax.xlane.f32.xlu0 %v617
        %v619 = vpop.xlane.xlu0 %618
        %v620 = vsel %vm612, %v606, -inf
        %621 = vmax.xlane.f32.xlu0 %v620
        %v622 = vpop.xlane.xlu0 %621
        %v623 = vsel %vm616, %v607, -inf
        %624 = vmax.xlane.f32.xlu0 %v623
        %v625 = vpop.xlane.xlu0 %624
        %v626 = vsel %vm612, %v608, -inf
        %627 = vmax.xlane.f32.xlu0 %v626
        %v628 = vpop.xlane.xlu0 %627
        %v629 = vsel %vm616, %v609, -inf
        %630 = vmax.xlane.f32.xlu0 %v629
        %v631 = vpop.xlane.xlu0 %630
        %v632 = vsel %vm612, %v610, -inf
        %633 = vmax.xlane.f32.xlu0 %v632
        %v634 = vpop.xlane.xlu0 %633
        %v635 = vsel %vm616, %v611, -inf
        %636 = vmax.xlane.f32.xlu0 %v635
        %v637 = vpop.xlane.xlu0 %636
        %v638 = vsub.f32 %v604, %v615
        %v639 = vsub.f32 %v605, %v619
        %v640 = vsub.f32 %v606, %v622
        %v641 = vsub.f32 %v607, %v625
        %v642 = vsub.f32 %v608, %v628
        %v643 = vsub.f32 %v609, %v631
        %v644 = vsub.f32 %v610, %v634
        %v645 = vsub.f32 %v611, %v637
        %v646 = vmul.f32 %v638, 1.442695
        %v647 = vpow.pop %v646
        %v648 = vmul.f32 %v639, 1.442695
        %v649 = vpow.pop %v648
        %v650 = vmul.f32 %v640, 1.442695
        %v651 = vpow.pop %v650
        %v652 = vmul.f32 %v641, 1.442695
        %v653 = vpow.pop %v652
        %v654 = vmul.f32 %v642, 1.442695
        %v655 = vpow.pop %v654
        %v656 = vmul.f32 %v643, 1.442695
        %v657 = vpow.pop %v656
        %v658 = vmul.f32 %v644, 1.442695
        %v659 = vpow.pop %v658
        %v660 = vmul.f32 %v645, 1.442695
        %v661 = vpow.pop %v660
        %v662 = vsel %vm612, %v647, 0.0
        %663 = vadd.xlane.f32.xlu0 %v662
        %v664 = vpop.xlane.xlu0 %663
        %v665 = vsel %vm616, %v649, 0.0
        %666 = vadd.xlane.f32.xlu0 %v665
        %v667 = vpop.xlane.xlu0 %666
        %v668 = vsel %vm612, %v651, 0.0
        %669 = vadd.xlane.f32.xlu0 %v668
        %v670 = vpop.xlane.xlu0 %669
        %v671 = vsel %vm616, %v653, 0.0
        %672 = vadd.xlane.f32.xlu0 %v671
        %v673 = vpop.xlane.xlu0 %672
        %v674 = vsel %vm612, %v655, 0.0
        %675 = vadd.xlane.f32.xlu0 %v674
        %v676 = vpop.xlane.xlu0 %675
        %v677 = vsel %vm616, %v657, 0.0
        %678 = vadd.xlane.f32.xlu0 %v677
        %v679 = vpop.xlane.xlu0 %678
        %v680 = vsel %vm612, %v659, 0.0
        %681 = vadd.xlane.f32.xlu0 %v680
        %v682 = vpop.xlane.xlu0 %681
        %v683 = vsel %vm616, %v661, 0.0
        %684 = vadd.xlane.f32.xlu0 %v683
        %v685 = vpop.xlane.xlu0 %684
        %v686 = vrcp.pop %v664
        %v687 = vrcp.pop %v667
        %v688 = vrcp.pop %v670
        %v689 = vrcp.pop %v673
        %v690 = vrcp.pop %v676
        %v691 = vrcp.pop %v679
        %v692 = vrcp.pop %v682
        %v693 = vrcp.pop %v685
        %v694 = vmul.f32 %v647, %v686
        %v695 = vmul.f32 %v649, %v687
        %v696 = vmul.f32 %v651, %v688
        %v697 = vmul.f32 %v653, %v689
        %v698 = vmul.f32 %v655, %v690
        %v699 = vmul.f32 %v657, %v691
        %v700 = vmul.f32 %v659, %v692
        %v701 = vmul.f32 %v661, %v693
        %v702 = vpack.c.bf16 %v695, %v694
        %v703 = vpack.c.bf16 %v697, %v696
        %v704 = vpack.c.bf16 %v699, %v698
        %v705 = vpack.c.bf16 %v701, %v700
        %v707 = vsel %vm612, %v702, 0
        %vm709 = vcmask 1043456
        %v711 = vsel %vm709, %v277, 0
        %713 = vmatprep.subr.bf16.mxu0 0
        %714 = vmatpush1.bf16.msra.mxu0 0
        %715 = vmatprep.subr.bf16.mxu0 0
        %716 = vmatpush1.bf16.msra.mxu0 0
        %717 = vmatprep.subr.bf16.mxu0 0
        %718 = vmatpush1.bf16.msra.mxu0 0
        %719 = vmatprep.subr.bf16.mxu0 0
        %720 = vmatpush1.bf16.msra.mxu0 0
        %721 = vmatprep.subr.bf16.mxu0 0
        %722 = vmatpush1.bf16.msra.mxu0 0
        %723 = vmatprep.subr.bf16.mxu0 0
        %724 = vmatpush1.bf16.msra.mxu0 0
        %725 = vmatprep.subr.bf16.mxu0 0
        %726 = vmatpush1.bf16.msra.mxu0 0
        %727 = vmatprep.subr.bf16.mxu0 0
        %728 = vmatpush1.bf16.msra.mxu0 %v711
        %729 = vmatprep.subr.bf16.mxu0 0
        %730 = vmatpush2.bf16.msra.mxu0 0
        %731 = vmatprep.subr.bf16.mxu0 0
        %732 = vmatpush2.bf16.msra.mxu0 0
        %733 = vmatprep.subr.bf16.mxu0 0
        %734 = vmatpush2.bf16.msra.mxu0 0
        %735 = vmatprep.subr.bf16.mxu0 0
        %736 = vmatpush2.bf16.msra.mxu0 0
        %737 = vmatprep.subr.bf16.mxu0 0
        %738 = vmatpush2.bf16.msra.mxu0 0
        %739 = vmatprep.subr.bf16.mxu0 0
        %740 = vmatpush2.bf16.msra.mxu0 0
        %741 = vmatprep.subr.bf16.mxu0 0
        %742 = vmatpush2.bf16.msra.mxu0 0
        %743 = vmatprep.subr.bf16.mxu0 0
        %744 = vmatpush2.bf16.msra.mxu0 0
        %745 = vmatprep.mubr.bf16.mxu0 0
        %746 = vmatmul.mubr.bf16.gmra.mxu0 %v707
        %v747 = vpop.f32.mrf.mxu0
        %v748 = vadd.f32 0.0, %v747
        %v749 = vpop.f32.mrf.mxu0
        %v750 = vpop.f32.mrf.mxu0
        %v751 = vadd.f32 0.0, %v750
        %v752 = vpop.f32.mrf.mxu0
        %753 = vdwg.mxu0
        %v755 = vsel %vm612, %v703, 0
        %v758 = vsel %vm709, %v278, 0
        %760 = vmatprep.subr.bf16.mxu0 0
        %761 = vmatpush1.bf16.msra.mxu0 0
        %762 = vmatprep.subr.bf16.mxu0 0
        %763 = vmatpush1.bf16.msra.mxu0 0
        %764 = vmatprep.subr.bf16.mxu0 0
        %765 = vmatpush1.bf16.msra.mxu0 0
        %766 = vmatprep.subr.bf16.mxu0 0
        %767 = vmatpush1.bf16.msra.mxu0 0
        %768 = vmatprep.subr.bf16.mxu0 0
        %769 = vmatpush1.bf16.msra.mxu0 0
        %770 = vmatprep.subr.bf16.mxu0 0
        %771 = vmatpush1.bf16.msra.mxu0 0
        %772 = vmatprep.subr.bf16.mxu0 0
        %773 = vmatpush1.bf16.msra.mxu0 0
        %774 = vmatprep.subr.bf16.mxu0 0
        %775 = vmatpush1.bf16.msra.mxu0 %v758
        %776 = vmatprep.subr.bf16.mxu0 0
        %777 = vmatpush2.bf16.msra.mxu0 0
        %778 = vmatprep.subr.bf16.mxu0 0
        %779 = vmatpush2.bf16.msra.mxu0 0
        %780 = vmatprep.subr.bf16.mxu0 0
        %781 = vmatpush2.bf16.msra.mxu0 0
        %782 = vmatprep.subr.bf16.mxu0 0
        %783 = vmatpush2.bf16.msra.mxu0 0
        %784 = vmatprep.subr.bf16.mxu0 0
        %785 = vmatpush2.bf16.msra.mxu0 0
        %786 = vmatprep.subr.bf16.mxu0 0
        %787 = vmatpush2.bf16.msra.mxu0 0
        %788 = vmatprep.subr.bf16.mxu0 0
        %789 = vmatpush2.bf16.msra.mxu0 0
        %790 = vmatprep.subr.bf16.mxu0 0
        %791 = vmatpush2.bf16.msra.mxu0 0
        %792 = vmatprep.mubr.bf16.mxu0 0
        %793 = vmatmul.mubr.bf16.gmra.mxu0 %v755
        %v794 = vpop.f32.mrf.mxu0
        %v795 = vadd.f32 0.0, %v794
        %v796 = vpop.f32.mrf.mxu0
        %v797 = vpop.f32.mrf.mxu0
        %v798 = vadd.f32 0.0, %v797
        %v799 = vpop.f32.mrf.mxu0
        %800 = vdwg.mxu0
        %v802 = vsel %vm612, %v704, 0
        %v805 = vsel %vm709, %v279, 0
        %807 = vmatprep.subr.bf16.mxu0 0
        %808 = vmatpush1.bf16.msra.mxu0 0
        %809 = vmatprep.subr.bf16.mxu0 0
        %810 = vmatpush1.bf16.msra.mxu0 0
        %811 = vmatprep.subr.bf16.mxu0 0
        %812 = vmatpush1.bf16.msra.mxu0 0
        %813 = vmatprep.subr.bf16.mxu0 0
        %814 = vmatpush1.bf16.msra.mxu0 0
        %815 = vmatprep.subr.bf16.mxu0 0
        %816 = vmatpush1.bf16.msra.mxu0 0
        %817 = vmatprep.subr.bf16.mxu0 0
        %818 = vmatpush1.bf16.msra.mxu0 0
        %819 = vmatprep.subr.bf16.mxu0 0
        %820 = vmatpush1.bf16.msra.mxu0 0
        %821 = vmatprep.subr.bf16.mxu0 0
        %822 = vmatpush1.bf16.msra.mxu0 %v805
        %823 = vmatprep.subr.bf16.mxu0 0
        %824 = vmatpush2.bf16.msra.mxu0 0
        %825 = vmatprep.subr.bf16.mxu0 0
        %826 = vmatpush2.bf16.msra.mxu0 0
        %827 = vmatprep.subr.bf16.mxu0 0
        %828 = vmatpush2.bf16.msra.mxu0 0
        %829 = vmatprep.subr.bf16.mxu0 0
        %830 = vmatpush2.bf16.msra.mxu0 0
        %831 = vmatprep.subr.bf16.mxu0 0
        %832 = vmatpush2.bf16.msra.mxu0 0
        %833 = vmatprep.subr.bf16.mxu0 0
        %834 = vmatpush2.bf16.msra.mxu0 0
        %835 = vmatprep.subr.bf16.mxu0 0
        %836 = vmatpush2.bf16.msra.mxu0 0
        %837 = vmatprep.subr.bf16.mxu0 0
        %838 = vmatpush2.bf16.msra.mxu0 0
        %839 = vmatprep.mubr.bf16.mxu0 0
        %840 = vmatmul.mubr.bf16.gmra.mxu0 %v802
        %v841 = vpop.f32.mrf.mxu0
        %v842 = vadd.f32 0.0, %v841
        %v843 = vpop.f32.mrf.mxu0
        %v844 = vpop.f32.mrf.mxu0
        %v845 = vadd.f32 0.0, %v844
        %v846 = vpop.f32.mrf.mxu0
        %847 = vdwg.mxu0
        %v849 = vsel %vm612, %v705, 0
        %v852 = vsel %vm709, %v280, 0
        %854 = vmatprep.subr.bf16.mxu0 0
        %855 = vmatpush1.bf16.msra.mxu0 0
        %856 = vmatprep.subr.bf16.mxu0 0
        %857 = vmatpush1.bf16.msra.mxu0 0
        %858 = vmatprep.subr.bf16.mxu0 0
        %859 = vmatpush1.bf16.msra.mxu0 0
        %860 = vmatprep.subr.bf16.mxu0 0
        %861 = vmatpush1.bf16.msra.mxu0 0
        %862 = vmatprep.subr.bf16.mxu0 0
        %863 = vmatpush1.bf16.msra.mxu0 0
        %864 = vmatprep.subr.bf16.mxu0 0
        %865 = vmatpush1.bf16.msra.mxu0 0
        %866 = vmatprep.subr.bf16.mxu0 0
        %867 = vmatpush1.bf16.msra.mxu0 0
        %868 = vmatprep.subr.bf16.mxu0 0
        %869 = vmatpush1.bf16.msra.mxu0 %v852
        %870 = vmatprep.subr.bf16.mxu0 0
        %871 = vmatpush2.bf16.msra.mxu0 0
        %872 = vmatprep.subr.bf16.mxu0 0
        %873 = vmatpush2.bf16.msra.mxu0 0
        %874 = vmatprep.subr.bf16.mxu0 0
        %875 = vmatpush2.bf16.msra.mxu0 0
        %876 = vmatprep.subr.bf16.mxu0 0
        %877 = vmatpush2.bf16.msra.mxu0 0
        %878 = vmatprep.subr.bf16.mxu0 0
        %879 = vmatpush2.bf16.msra.mxu0 0
        %880 = vmatprep.subr.bf16.mxu0 0
        %881 = vmatpush2.bf16.msra.mxu0 0
        %882 = vmatprep.subr.bf16.mxu0 0
        %883 = vmatpush2.bf16.msra.mxu0 0
        %884 = vmatprep.subr.bf16.mxu0 0
        %885 = vmatpush2.bf16.msra.mxu0 0
        %886 = vmatprep.mubr.bf16.mxu0 0
        %887 = vmatmul.mubr.bf16.gmra.mxu0 %v849
        %v888 = vpop.f32.mrf.mxu0
        %v889 = vadd.f32 0.0, %v888
        %v890 = vpop.f32.mrf.mxu0
        %v891 = vpop.f32.mrf.mxu0
        %v892 = vadd.f32 0.0, %v891
        %v893 = vpop.f32.mrf.mxu0
        %894 = vdwg.mxu0
        %v895 = vlaneseq
        %vm896 = vcmp.ge.s32.totalorder %v895, 0
        %vm897 = vcmp.lt.s32.totalorder %v895, 32
        %vm898 = vmand %vm896, %vm897
        %899 = vst.msk [vmem:[%s257] sm:$0x1] %vm898, %v748
        %900 = vst.msk [vmem:[%s257 + $0x3] sm:$0x1] %vm898, %v795
        %901 = vst.msk [vmem:[%s257 + $0x6] sm:$0x1] %vm898, %v842
        %902 = vst.msk [vmem:[%s257 + $0x9] sm:$0x1] %vm898, %v889
        %v908 = vunpack.c.l.s4 1966171168
        %v909 = vunpack.c.0.s8 %v908
        %v910 = vlaneseq
        %v911 = vshrl.u32 %v910, 7
        %v912 = vsub.s32 %v909, %v911
        %v913 = vrot.slane %v748, %v912
        %v914 = vcombine.high %v913, %v913
        %v916 = vunpack.c.l.s4 1966171168
        %v917 = vunpack.c.0.s8 %v916
        %v918 = vlaneseq
        %v919 = vshrl.u32 %v918, 7
        %v920 = vsub.s32 %v917, %v919
        %v921 = vrot.slane %v913, %v920
        %v923 = vunpack.c.l.s4 1966171168
        %v924 = vunpack.c.0.s8 %v923
        %v925 = vlaneseq
        %v926 = vshrl.u32 %v925, 7
        %v927 = vsub.s32 %v924, %v926
        %v928 = vrot.slane %v914, %v927
        %v930 = vunpack.c.l.s4 1966171168
        %v931 = vunpack.c.0.s8 %v930
        %v932 = vlaneseq
        %v933 = vshrl.u32 %v932, 7
        %v934 = vsub.s32 %v931, %v933
        %v935 = vrot.slane %v795, %v934
        %v936 = vcombine.high %v935, %v935
        %v938 = vunpack.c.l.s4 1966171168
        %v939 = vunpack.c.0.s8 %v938
        %v940 = vlaneseq
        %v941 = vshrl.u32 %v940, 7
        %v942 = vsub.s32 %v939, %v941
        %v943 = vrot.slane %v935, %v942
        %v945 = vunpack.c.l.s4 1966171168
        %v946 = vunpack.c.0.s8 %v945
        %v947 = vlaneseq
        %v948 = vshrl.u32 %v947, 7
        %v949 = vsub.s32 %v946, %v948
        %v950 = vrot.slane %v936, %v949
        %v952 = vunpack.c.l.s4 1966171168
        %v953 = vunpack.c.0.s8 %v952
        %v954 = vlaneseq
        %v955 = vshrl.u32 %v954, 7
        %v956 = vsub.s32 %v953, %v955
        %v957 = vrot.slane %v842, %v956
        %v958 = vcombine.high %v957, %v957
        %v960 = vunpack.c.l.s4 1966171168
        %v961 = vunpack.c.0.s8 %v960
        %v962 = vlaneseq
        %v963 = vshrl.u32 %v962, 7
        %v964 = vsub.s32 %v961, %v963
        %v965 = vrot.slane %v957, %v964
        %v967 = vunpack.c.l.s4 1966171168
        %v968 = vunpack.c.0.s8 %v967
        %v969 = vlaneseq
        %v970 = vshrl.u32 %v969, 7
        %v971 = vsub.s32 %v968, %v970
        %v972 = vrot.slane %v958, %v971
        %v974 = vunpack.c.l.s4 1966171168
        %v975 = vunpack.c.0.s8 %v974
        %v976 = vlaneseq
        %v977 = vshrl.u32 %v976, 7
        %v978 = vsub.s32 %v975, %v977
        %v979 = vrot.slane %v889, %v978
        %v980 = vcombine.high %v979, %v979
        %v982 = vunpack.c.l.s4 1966171168
        %v983 = vunpack.c.0.s8 %v982
        %v984 = vlaneseq
        %v985 = vshrl.u32 %v984, 7
        %v986 = vsub.s32 %v983, %v985
        %v987 = vrot.slane %v979, %v986
        %v989 = vunpack.c.l.s4 1966171168
        %v990 = vunpack.c.0.s8 %v989
        %v991 = vlaneseq
        %v992 = vshrl.u32 %v991, 7
        %v993 = vsub.s32 %v990, %v992
        %v994 = vrot.slane %v980, %v993
        %995 = vrot.lane.b32.xlu0 %v928, 32
        %v996 = vpop.permute.xlu0 %995
        %997 = vrot.lane.b32.xlu0 %v950, 32
        %v998 = vpop.permute.xlu0 %997
        %999 = vrot.lane.b32.xlu0 %v972, 32
        %v1000 = vpop.permute.xlu0 %999
        %1001 = vrot.lane.b32.xlu0 %v994, 32
        %v1002 = vpop.permute.xlu0 %1001
        %vm1007 = vcmp.ge.s32.totalorder %v895, 32
        %vm1008 = vcmp.lt.s32.totalorder %v895, 64
        %vm1009 = vmand %vm1007, %vm1008
        %1010 = vst.msk [vmem:[%s257] sm:$0x1] %vm1009, %v996
        %1011 = vst.msk [vmem:[%s257 + $0x3] sm:$0x1] %vm1009, %v998
        %1012 = vst.msk [vmem:[%s257 + $0x6] sm:$0x1] %vm1009, %v1000
        %1013 = vst.msk [vmem:[%s257 + $0x9] sm:$0x1] %vm1009, %v1002
        %v1014 = vcombine.high %v921, %v921
        %v1015 = vcombine.high %v943, %v943
        %v1016 = vcombine.high %v965, %v965
        %v1017 = vcombine.high %v987, %v987
        %1018 = vrot.lane.b32.xlu0 %v1014, 64
        %v1019 = vpop.permute.xlu0 %1018
        %1020 = vrot.lane.b32.xlu0 %v1015, 64
        %v1021 = vpop.permute.xlu0 %1020
        %1022 = vrot.lane.b32.xlu0 %v1016, 64
        %v1023 = vpop.permute.xlu0 %1022
        %1024 = vrot.lane.b32.xlu0 %v1017, 64
        %v1025 = vpop.permute.xlu0 %1024
        %vm1030 = vcmp.ge.s32.totalorder %v895, 64
        %vm1031 = vcmp.lt.s32.totalorder %v895, 96
        %vm1032 = vmand %vm1030, %vm1031
        %1033 = vst.msk [vmem:[%s257] sm:$0x1] %vm1032, %v1019
        %1034 = vst.msk [vmem:[%s257 + $0x3] sm:$0x1] %vm1032, %v1021
        %1035 = vst.msk [vmem:[%s257 + $0x6] sm:$0x1] %vm1032, %v1023
        %1036 = vst.msk [vmem:[%s257 + $0x9] sm:$0x1] %vm1032, %v1025
        %v1037 = vcombine.high %v928, %v928
        %v1038 = vcombine.high %v950, %v950
        %v1039 = vcombine.high %v972, %v972
        %v1040 = vcombine.high %v994, %v994
        %1041 = vrot.lane.b32.xlu0 %v1037, 96
        %v1042 = vpop.permute.xlu0 %1041
        %1043 = vrot.lane.b32.xlu0 %v1038, 96
        %v1044 = vpop.permute.xlu0 %1043
        %1045 = vrot.lane.b32.xlu0 %v1039, 96
        %v1046 = vpop.permute.xlu0 %1045
        %1047 = vrot.lane.b32.xlu0 %v1040, 96
        %v1048 = vpop.permute.xlu0 %1047
        %vm1053 = vcmp.ge.s32.totalorder %v895, 96
        %vm1054 = vcmp.lt.s32.totalorder %v895, 128
        %vm1055 = vmand %vm1053, %vm1054
        %1056 = vst.msk [vmem:[%s257] sm:$0x1] %vm1055, %v1042
        %1057 = vst.msk [vmem:[%s257 + $0x3] sm:$0x1] %vm1055, %v1044
        %1058 = vst.msk [vmem:[%s257 + $0x6] sm:$0x1] %vm1055, %v1046
        %1059 = vst.msk [vmem:[%s257 + $0x9] sm:$0x1] %vm1055, %v1048
        %v1060 = vcombine.high %v748, %v748
        %v1062 = vunpack.c.l.s4 1966171168
        %v1063 = vunpack.c.0.s8 %v1062
        %v1064 = vlaneseq
        %v1065 = vshrl.u32 %v1064, 7
        %v1066 = vsub.s32 %v1063, %v1065
        %v1067 = vrot.slane %v1060, %v1066
        %v1069 = vunpack.c.l.s4 1966171168
        %v1070 = vunpack.c.0.s8 %v1069
        %v1071 = vlaneseq
        %v1072 = vshrl.u32 %v1071, 7
        %v1073 = vsub.s32 %v1070, %v1072
        %v1074 = vrot.slane %v1067, %v1073
        %v1075 = vcombine.high %v795, %v795
        %v1077 = vunpack.c.l.s4 1966171168
        %v1078 = vunpack.c.0.s8 %v1077
        %v1079 = vlaneseq
        %v1080 = vshrl.u32 %v1079, 7
        %v1081 = vsub.s32 %v1078, %v1080
        %v1082 = vrot.slane %v1075, %v1081
        %v1084 = vunpack.c.l.s4 1966171168
        %v1085 = vunpack.c.0.s8 %v1084
        %v1086 = vlaneseq
        %v1087 = vshrl.u32 %v1086, 7
        %v1088 = vsub.s32 %v1085, %v1087
        %v1089 = vrot.slane %v1082, %v1088
        %v1090 = vcombine.high %v842, %v842
        %v1092 = vunpack.c.l.s4 1966171168
        %v1093 = vunpack.c.0.s8 %v1092
        %v1094 = vlaneseq
        %v1095 = vshrl.u32 %v1094, 7
        %v1096 = vsub.s32 %v1093, %v1095
        %v1097 = vrot.slane %v1090, %v1096
        %v1099 = vunpack.c.l.s4 1966171168
        %v1100 = vunpack.c.0.s8 %v1099
        %v1101 = vlaneseq
        %v1102 = vshrl.u32 %v1101, 7
        %v1103 = vsub.s32 %v1100, %v1102
        %v1104 = vrot.slane %v1097, %v1103
        %v1105 = vcombine.high %v889, %v889
        %v1107 = vunpack.c.l.s4 1966171168
        %v1108 = vunpack.c.0.s8 %v1107
        %v1109 = vlaneseq
        %v1110 = vshrl.u32 %v1109, 7
        %v1111 = vsub.s32 %v1108, %v1110
        %v1112 = vrot.slane %v1105, %v1111
        %v1114 = vunpack.c.l.s4 1966171168
        %v1115 = vunpack.c.0.s8 %v1114
        %v1116 = vlaneseq
        %v1117 = vshrl.u32 %v1116, 7
        %v1118 = vsub.s32 %v1115, %v1117
        %v1119 = vrot.slane %v1112, %v1118
        %1124 = vst.msk [vmem:[%s257 + $0x1] sm:$0x1] %vm898, %v1074
        %1125 = vst.msk [vmem:[%s257 + $0x4] sm:$0x1] %vm898, %v1089
        %1126 = vst.msk [vmem:[%s257 + $0x7] sm:$0x1] %vm898, %v1104
        %1127 = vst.msk [vmem:[%s257 + $0xa] sm:$0x1] %vm898, %v1119
        %v1128 = vcombine.high %v1067, %v1067
        %v1130 = vunpack.c.l.s4 1966171168
        %v1131 = vunpack.c.0.s8 %v1130
        %v1132 = vlaneseq
        %v1133 = vshrl.u32 %v1132, 7
        %v1134 = vsub.s32 %v1131, %v1133
        %v1135 = vrot.slane %v1128, %v1134
        %v1136 = vcombine.high %v1082, %v1082
        %v1138 = vunpack.c.l.s4 1966171168
        %v1139 = vunpack.c.0.s8 %v1138
        %v1140 = vlaneseq
        %v1141 = vshrl.u32 %v1140, 7
        %v1142 = vsub.s32 %v1139, %v1141
        %v1143 = vrot.slane %v1136, %v1142
        %v1144 = vcombine.high %v1097, %v1097
        %v1146 = vunpack.c.l.s4 1966171168
        %v1147 = vunpack.c.0.s8 %v1146
        %v1148 = vlaneseq
        %v1149 = vshrl.u32 %v1148, 7
        %v1150 = vsub.s32 %v1147, %v1149
        %v1151 = vrot.slane %v1144, %v1150
        %v1152 = vcombine.high %v1112, %v1112
        %v1154 = vunpack.c.l.s4 1966171168
        %v1155 = vunpack.c.0.s8 %v1154
        %v1156 = vlaneseq
        %v1157 = vshrl.u32 %v1156, 7
        %v1158 = vsub.s32 %v1155, %v1157
        %v1159 = vrot.slane %v1152, %v1158
        %1160 = vrot.lane.b32.xlu0 %v1135, 32
        %v1161 = vpop.permute.xlu0 %1160
        %1162 = vrot.lane.b32.xlu0 %v1143, 32
        %v1163 = vpop.permute.xlu0 %1162
        %1164 = vrot.lane.b32.xlu0 %v1151, 32
        %v1165 = vpop.permute.xlu0 %1164
        %1166 = vrot.lane.b32.xlu0 %v1159, 32
        %v1167 = vpop.permute.xlu0 %1166
        %1172 = vst.msk [vmem:[%s257 + $0x1] sm:$0x1] %vm1009, %v1161
        %1173 = vst.msk [vmem:[%s257 + $0x4] sm:$0x1] %vm1009, %v1163
        %1174 = vst.msk [vmem:[%s257 + $0x7] sm:$0x1] %vm1009, %v1165
        %1175 = vst.msk [vmem:[%s257 + $0xa] sm:$0x1] %vm1009, %v1167
        %v1176 = vcombine.high %v1074, %v1074
        %v1177 = vcombine.high %v1089, %v1089
        %v1178 = vcombine.high %v1104, %v1104
        %v1179 = vcombine.high %v1119, %v1119
        %1180 = vrot.lane.b32.xlu0 %v1176, 64
        %v1181 = vpop.permute.xlu0 %1180
        %1182 = vrot.lane.b32.xlu0 %v1177, 64
        %v1183 = vpop.permute.xlu0 %1182
        %1184 = vrot.lane.b32.xlu0 %v1178, 64
        %v1185 = vpop.permute.xlu0 %1184
        %1186 = vrot.lane.b32.xlu0 %v1179, 64
        %v1187 = vpop.permute.xlu0 %1186
        %1192 = vst.msk [vmem:[%s257 + $0x1] sm:$0x1] %vm1032, %v1181
        %1193 = vst.msk [vmem:[%s257 + $0x4] sm:$0x1] %vm1032, %v1183
        %1194 = vst.msk [vmem:[%s257 + $0x7] sm:$0x1] %vm1032, %v1185
        %1195 = vst.msk [vmem:[%s257 + $0xa] sm:$0x1] %vm1032, %v1187
        %v1196 = vcombine.high %v1135, %v1135
        %v1197 = vcombine.high %v1143, %v1143
        %v1198 = vcombine.high %v1151, %v1151
        %v1199 = vcombine.high %v1159, %v1159
        %1200 = vrot.lane.b32.xlu0 %v1196, 96
        %v1201 = vpop.permute.xlu0 %1200
        %1202 = vrot.lane.b32.xlu0 %v1197, 96
        %v1203 = vpop.permute.xlu0 %1202
        %1204 = vrot.lane.b32.xlu0 %v1198, 96
        %v1205 = vpop.permute.xlu0 %1204
        %1206 = vrot.lane.b32.xlu0 %v1199, 96
        %v1207 = vpop.permute.xlu0 %1206
        %1212 = vst.msk [vmem:[%s257 + $0x1] sm:$0x1] %vm1055, %v1201
        %1213 = vst.msk [vmem:[%s257 + $0x4] sm:$0x1] %vm1055, %v1203
        %1214 = vst.msk [vmem:[%s257 + $0x7] sm:$0x1] %vm1055, %v1205
        %1215 = vst.msk [vmem:[%s257 + $0xa] sm:$0x1] %vm1055, %v1207
        %1216 = vst.msk [vmem:[%s257 + $0x2] sm:$0x1] %vm898, %v751
        %1217 = vst.msk [vmem:[%s257 + $0x5] sm:$0x1] %vm898, %v798
        %1218 = vst.msk [vmem:[%s257 + $0x8] sm:$0x1] %vm898, %v845
        %1219 = vst.msk [vmem:[%s257 + $0xb] sm:$0x1] %vm898, %v892
        %v1225 = vunpack.c.l.s4 1966171168
        %v1226 = vunpack.c.0.s8 %v1225
        %v1227 = vlaneseq
        %v1228 = vshrl.u32 %v1227, 7
        %v1229 = vsub.s32 %v1226, %v1228
        %v1230 = vrot.slane %v751, %v1229
        %v1231 = vcombine.high %v1230, %v1230
        %v1233 = vunpack.c.l.s4 1966171168
        %v1234 = vunpack.c.0.s8 %v1233
        %v1235 = vlaneseq
        %v1236 = vshrl.u32 %v1235, 7
        %v1237 = vsub.s32 %v1234, %v1236
        %v1238 = vrot.slane %v1231, %v1237
        %v1240 = vunpack.c.l.s4 1966171168
        %v1241 = vunpack.c.0.s8 %v1240
        %v1242 = vlaneseq
        %v1243 = vshrl.u32 %v1242, 7
        %v1244 = vsub.s32 %v1241, %v1243
        %v1245 = vrot.slane %v798, %v1244
        %v1246 = vcombine.high %v1245, %v1245
        %v1248 = vunpack.c.l.s4 1966171168
        %v1249 = vunpack.c.0.s8 %v1248
        %v1250 = vlaneseq
        %v1251 = vshrl.u32 %v1250, 7
        %v1252 = vsub.s32 %v1249, %v1251
        %v1253 = vrot.slane %v1246, %v1252
        %v1255 = vunpack.c.l.s4 1966171168
        %v1256 = vunpack.c.0.s8 %v1255
        %v1257 = vlaneseq
        %v1258 = vshrl.u32 %v1257, 7
        %v1259 = vsub.s32 %v1256, %v1258
        %v1260 = vrot.slane %v845, %v1259
        %v1261 = vcombine.high %v1260, %v1260
        %v1263 = vunpack.c.l.s4 1966171168
        %v1264 = vunpack.c.0.s8 %v1263
        %v1265 = vlaneseq
        %v1266 = vshrl.u32 %v1265, 7
        %v1267 = vsub.s32 %v1264, %v1266
        %v1268 = vrot.slane %v1261, %v1267
        %v1270 = vunpack.c.l.s4 1966171168
        %v1271 = vunpack.c.0.s8 %v1270
        %v1272 = vlaneseq
        %v1273 = vshrl.u32 %v1272, 7
        %v1274 = vsub.s32 %v1271, %v1273
        %v1275 = vrot.slane %v892, %v1274
        %v1276 = vcombine.high %v1275, %v1275
        %v1278 = vunpack.c.l.s4 1966171168
        %v1279 = vunpack.c.0.s8 %v1278
        %v1280 = vlaneseq
        %v1281 = vshrl.u32 %v1280, 7
        %v1282 = vsub.s32 %v1279, %v1281
        %v1283 = vrot.slane %v1276, %v1282
        %1284 = vrot.lane.b32.xlu0 %v1238, 32
        %v1285 = vpop.permute.xlu0 %1284
        %1286 = vrot.lane.b32.xlu0 %v1253, 32
        %v1287 = vpop.permute.xlu0 %1286
        %1288 = vrot.lane.b32.xlu0 %v1268, 32
        %v1289 = vpop.permute.xlu0 %1288
        %1290 = vrot.lane.b32.xlu0 %v1283, 32
        %v1291 = vpop.permute.xlu0 %1290
        %1296 = vst.msk [vmem:[%s257 + $0x2] sm:$0x1] %vm1009, %v1285
        %1297 = vst.msk [vmem:[%s257 + $0x5] sm:$0x1] %vm1009, %v1287
        %1298 = vst.msk [vmem:[%s257 + $0x8] sm:$0x1] %vm1009, %v1289
        %1299 = vst.msk [vmem:[%s257 + $0xb] sm:$0x1] %vm1009, %v1291
        %v1301 = vsel %vm612, %v694, 0
        %v1304 = vsel %vm612, %v695, 0
        %1306 = vmatprep.subr.mxu0 0.0
        %1307 = vmatpush1.xpose.msra.mxu0 0.0
        %1308 = vmatprep.subr.mxu0 0.0
        %1309 = vmatpush1.xpose.msra.mxu0 0.0
        %1310 = vmatprep.subr.mxu0 0.0
        %1311 = vmatpush1.xpose.msra.mxu0 0.0
        %1312 = vmatprep.subr.mxu0 0.0
        %1313 = vmatpush1.xpose.msra.mxu0 0.0
        %1314 = vmatprep.subr.mxu0 0.0
        %1315 = vmatpush1.xpose.msra.mxu0 0.0
        %1316 = vmatprep.subr.mxu0 0.0
        %1317 = vmatpush1.xpose.msra.mxu0 0.0
        %1318 = vmatprep.subr.mxu0 0.0
        %1319 = vmatpush1.xpose.msra.mxu0 0.0
        %1320 = vmatprep.subr.mxu0 0.0
        %1321 = vmatpush1.xpose.msra.mxu0 0.0
        %1322 = vmatprep.subr.mxu0 0.0
        %1323 = vmatpush1.xpose.msra.mxu0 0.0
        %1324 = vmatprep.subr.mxu0 0.0
        %1325 = vmatpush1.xpose.msra.mxu0 0.0
        %1326 = vmatprep.subr.mxu0 0.0
        %1327 = vmatpush1.xpose.msra.mxu0 0.0
        %1328 = vmatprep.subr.mxu0 0.0
        %1329 = vmatpush1.xpose.msra.mxu0 0.0
        %1330 = vmatprep.subr.mxu0 0.0
        %1331 = vmatpush1.xpose.msra.mxu0 0.0
        %1332 = vmatprep.subr.mxu0 0.0
        %1333 = vmatpush1.xpose.msra.mxu0 0.0
        %1334 = vmatprep.subr.mxu0 0.0
        %1335 = vmatpush1.xpose.msra.mxu0 %v1304
        %1336 = vmatprep.subr.mxu0 0.0
        %1337 = vmatpush1.xpose.msra.mxu0 %v1301
        %1338 = vmatprep.subr.mxu0 0.0
        %1339 = vmatpush2.xpose.msra.mxu0 0.0
        %1340 = vmatprep.subr.mxu0 0.0
        %1341 = vmatpush2.xpose.msra.mxu0 0.0
        %1342 = vmatprep.subr.mxu0 0.0
        %1343 = vmatpush2.xpose.msra.mxu0 0.0
        %1344 = vmatprep.subr.mxu0 0.0
        %1345 = vmatpush2.xpose.msra.mxu0 0.0
        %1346 = vmatprep.subr.mxu0 0.0
        %1347 = vmatpush2.xpose.msra.mxu0 0.0
        %1348 = vmatprep.subr.mxu0 0.0
        %1349 = vmatpush2.xpose.msra.mxu0 0.0
        %1350 = vmatprep.subr.mxu0 0.0
        %1351 = vmatpush2.xpose.msra.mxu0 0.0
        %1352 = vmatprep.subr.mxu0 0.0
        %1353 = vmatpush2.xpose.msra.mxu0 0.0
        %1354 = vmatprep.subr.mxu0 0.0
        %1355 = vmatpush2.xpose.msra.mxu0 0.0
        %1356 = vmatprep.subr.mxu0 0.0
        %1357 = vmatpush2.xpose.msra.mxu0 0.0
        %1358 = vmatprep.subr.mxu0 0.0
        %1359 = vmatpush2.xpose.msra.mxu0 0.0
        %1360 = vmatprep.subr.mxu0 0.0
        %1361 = vmatpush2.xpose.msra.mxu0 0.0
        %1362 = vmatprep.subr.mxu0 0.0
        %1363 = vmatpush2.xpose.msra.mxu0 0.0
        %1364 = vmatprep.subr.mxu0 0.0
        %1365 = vmatpush2.xpose.msra.mxu0 0.0
        %1366 = vmatprep.subr.mxu0 0.0
        %1367 = vmatpush2.xpose.msra.mxu0 0.0
        %1368 = vmatprep.subr.mxu0 0.0
        %1369 = vmatpush2.xpose.msra.mxu0 0.0
        %1370 = vmatprep.mubr.f32.mxu0 0.0
        %1371 = vmatmul.mubr.f32.gmra.mxu0 %v1301
        %v1372 = vpop.f32.mrf.mxu0
        %v1373 = vadd.f32 0.0, %v1372
        %v1374 = vpop.f32.mrf.mxu0
        %1375 = vmatprep.mubr.f32.mxu0 0.0
        %1376 = vmatmul.mubr.f32.gmra.mxu0 %v1304
        %v1377 = vpop.f32.mrf.mxu0
        %v1378 = vadd.f32 0.0, %v1377
        %v1379 = vpop.f32.mrf.mxu0
        %1380 = vdwg.mxu0
        %v1382 = vsel %vm612, %v696, 0
        %v1385 = vsel %vm612, %v697, 0
        %1387 = vmatprep.subr.mxu0 0.0
        %1388 = vmatpush1.xpose.msra.mxu0 0.0
        %1389 = vmatprep.subr.mxu0 0.0
        %1390 = vmatpush1.xpose.msra.mxu0 0.0
        %1391 = vmatprep.subr.mxu0 0.0
        %1392 = vmatpush1.xpose.msra.mxu0 0.0
        %1393 = vmatprep.subr.mxu0 0.0
        %1394 = vmatpush1.xpose.msra.mxu0 0.0
        %1395 = vmatprep.subr.mxu0 0.0
        %1396 = vmatpush1.xpose.msra.mxu0 0.0
        %1397 = vmatprep.subr.mxu0 0.0
        %1398 = vmatpush1.xpose.msra.mxu0 0.0
        %1399 = vmatprep.subr.mxu0 0.0
        %1400 = vmatpush1.xpose.msra.mxu0 0.0
        %1401 = vmatprep.subr.mxu0 0.0
        %1402 = vmatpush1.xpose.msra.mxu0 0.0
        %1403 = vmatprep.subr.mxu0 0.0
        %1404 = vmatpush1.xpose.msra.mxu0 0.0
        %1405 = vmatprep.subr.mxu0 0.0
        %1406 = vmatpush1.xpose.msra.mxu0 0.0
        %1407 = vmatprep.subr.mxu0 0.0
        %1408 = vmatpush1.xpose.msra.mxu0 0.0
        %1409 = vmatprep.subr.mxu0 0.0
        %1410 = vmatpush1.xpose.msra.mxu0 0.0
        %1411 = vmatprep.subr.mxu0 0.0
        %1412 = vmatpush1.xpose.msra.mxu0 0.0
        %1413 = vmatprep.subr.mxu0 0.0
        %1414 = vmatpush1.xpose.msra.mxu0 0.0
        %1415 = vmatprep.subr.mxu0 0.0
        %1416 = vmatpush1.xpose.msra.mxu0 %v1385
        %1417 = vmatprep.subr.mxu0 0.0
        %1418 = vmatpush1.xpose.msra.mxu0 %v1382
        %1419 = vmatprep.subr.mxu0 0.0
        %1420 = vmatpush2.xpose.msra.mxu0 0.0
        %1421 = vmatprep.subr.mxu0 0.0
        %1422 = vmatpush2.xpose.msra.mxu0 0.0
        %1423 = vmatprep.subr.mxu0 0.0
        %1424 = vmatpush2.xpose.msra.mxu0 0.0
        %1425 = vmatprep.subr.mxu0 0.0
        %1426 = vmatpush2.xpose.msra.mxu0 0.0
        %1427 = vmatprep.subr.mxu0 0.0
        %1428 = vmatpush2.xpose.msra.mxu0 0.0
        %1429 = vmatprep.subr.mxu0 0.0
        %1430 = vmatpush2.xpose.msra.mxu0 0.0
        %1431 = vmatprep.subr.mxu0 0.0
        %1432 = vmatpush2.xpose.msra.mxu0 0.0
        %1433 = vmatprep.subr.mxu0 0.0
        %1434 = vmatpush2.xpose.msra.mxu0 0.0
        %1435 = vmatprep.subr.mxu0 0.0
        %1436 = vmatpush2.xpose.msra.mxu0 0.0
        %1437 = vmatprep.subr.mxu0 0.0
        %1438 = vmatpush2.xpose.msra.mxu0 0.0
        %1439 = vmatprep.subr.mxu0 0.0
        %1440 = vmatpush2.xpose.msra.mxu0 0.0
        %1441 = vmatprep.subr.mxu0 0.0
        %1442 = vmatpush2.xpose.msra.mxu0 0.0
        %1443 = vmatprep.subr.mxu0 0.0
        %1444 = vmatpush2.xpose.msra.mxu0 0.0
        %1445 = vmatprep.subr.mxu0 0.0
        %1446 = vmatpush2.xpose.msra.mxu0 0.0
        %1447 = vmatprep.subr.mxu0 0.0
        %1448 = vmatpush2.xpose.msra.mxu0 0.0
        %1449 = vmatprep.subr.mxu0 0.0
        %1450 = vmatpush2.xpose.msra.mxu0 0.0
        %1451 = vmatprep.mubr.f32.mxu0 0.0
        %1452 = vmatmul.mubr.f32.gmra.mxu0 %v1382
        %v1453 = vpop.f32.mrf.mxu0
        %v1454 = vadd.f32 0.0, %v1453
        %v1455 = vpop.f32.mrf.mxu0
        %1456 = vmatprep.mubr.f32.mxu0 0.0
        %1457 = vmatmul.mubr.f32.gmra.mxu0 %v1385
        %v1458 = vpop.f32.mrf.mxu0
        %v1459 = vadd.f32 0.0, %v1458
        %v1460 = vpop.f32.mrf.mxu0
        %1461 = vdwg.mxu0
        %v1463 = vsel %vm612, %v698, 0
        %v1466 = vsel %vm612, %v699, 0
        %1468 = vmatprep.subr.mxu0 0.0
        %1469 = vmatpush1.xpose.msra.mxu0 0.0
        %1470 = vmatprep.subr.mxu0 0.0
        %1471 = vmatpush1.xpose.msra.mxu0 0.0
        %1472 = vmatprep.subr.mxu0 0.0
        %1473 = vmatpush1.xpose.msra.mxu0 0.0
        %1474 = vmatprep.subr.mxu0 0.0
        %1475 = vmatpush1.xpose.msra.mxu0 0.0
        %1476 = vmatprep.subr.mxu0 0.0
        %1477 = vmatpush1.xpose.msra.mxu0 0.0
        %1478 = vmatprep.subr.mxu0 0.0
        %1479 = vmatpush1.xpose.msra.mxu0 0.0
        %1480 = vmatprep.subr.mxu0 0.0
        %1481 = vmatpush1.xpose.msra.mxu0 0.0
        %1482 = vmatprep.subr.mxu0 0.0
        %1483 = vmatpush1.xpose.msra.mxu0 0.0
        %1484 = vmatprep.subr.mxu0 0.0
        %1485 = vmatpush1.xpose.msra.mxu0 0.0
        %1486 = vmatprep.subr.mxu0 0.0
        %1487 = vmatpush1.xpose.msra.mxu0 0.0
        %1488 = vmatprep.subr.mxu0 0.0
        %1489 = vmatpush1.xpose.msra.mxu0 0.0
        %1490 = vmatprep.subr.mxu0 0.0
        %1491 = vmatpush1.xpose.msra.mxu0 0.0
        %1492 = vmatprep.subr.mxu0 0.0
        %1493 = vmatpush1.xpose.msra.mxu0 0.0
        %1494 = vmatprep.subr.mxu0 0.0
        %1495 = vmatpush1.xpose.msra.mxu0 0.0
        %1496 = vmatprep.subr.mxu0 0.0
        %1497 = vmatpush1.xpose.msra.mxu0 %v1466
        %1498 = vmatprep.subr.mxu0 0.0
        %1499 = vmatpush1.xpose.msra.mxu0 %v1463
        %1500 = vmatprep.subr.mxu0 0.0
        %1501 = vmatpush2.xpose.msra.mxu0 0.0
        %1502 = vmatprep.subr.mxu0 0.0
        %1503 = vmatpush2.xpose.msra.mxu0 0.0
        %1504 = vmatprep.subr.mxu0 0.0
        %1505 = vmatpush2.xpose.msra.mxu0 0.0
        %1506 = vmatprep.subr.mxu0 0.0
        %1507 = vmatpush2.xpose.msra.mxu0 0.0
        %1508 = vmatprep.subr.mxu0 0.0
        %1509 = vmatpush2.xpose.msra.mxu0 0.0
        %1510 = vmatprep.subr.mxu0 0.0
        %1511 = vmatpush2.xpose.msra.mxu0 0.0
        %1512 = vmatprep.subr.mxu0 0.0
        %1513 = vmatpush2.xpose.msra.mxu0 0.0
        %1514 = vmatprep.subr.mxu0 0.0
        %1515 = vmatpush2.xpose.msra.mxu0 0.0
        %1516 = vmatprep.subr.mxu0 0.0
        %1517 = vmatpush2.xpose.msra.mxu0 0.0
        %1518 = vmatprep.subr.mxu0 0.0
        %1519 = vmatpush2.xpose.msra.mxu0 0.0
        %1520 = vmatprep.subr.mxu0 0.0
        %1521 = vmatpush2.xpose.msra.mxu0 0.0
        %1522 = vmatprep.subr.mxu0 0.0
        %1523 = vmatpush2.xpose.msra.mxu0 0.0
        %1524 = vmatprep.subr.mxu0 0.0
        %1525 = vmatpush2.xpose.msra.mxu0 0.0
        %1526 = vmatprep.subr.mxu0 0.0
        %1527 = vmatpush2.xpose.msra.mxu0 0.0
        %1528 = vmatprep.subr.mxu0 0.0
        %1529 = vmatpush2.xpose.msra.mxu0 0.0
        %1530 = vmatprep.subr.mxu0 0.0
        %1531 = vmatpush2.xpose.msra.mxu0 0.0
        %1532 = vmatprep.mubr.f32.mxu0 0.0
        %1533 = vmatmul.mubr.f32.gmra.mxu0 %v1463
        %v1534 = vpop.f32.mrf.mxu0
        %v1535 = vadd.f32 0.0, %v1534
        %v1536 = vpop.f32.mrf.mxu0
        %1537 = vmatprep.mubr.f32.mxu0 0.0
        %1538 = vmatmul.mubr.f32.gmra.mxu0 %v1466
        %v1539 = vpop.f32.mrf.mxu0
        %v1540 = vadd.f32 0.0, %v1539
        %v1541 = vpop.f32.mrf.mxu0
        %1542 = vdwg.mxu0
        %v1544 = vsel %vm612, %v700, 0
        %v1547 = vsel %vm612, %v701, 0
        %1549 = vmatprep.subr.mxu0 0.0
        %1550 = vmatpush1.xpose.msra.mxu0 0.0
        %1551 = vmatprep.subr.mxu0 0.0
        %1552 = vmatpush1.xpose.msra.mxu0 0.0
        %1553 = vmatprep.subr.mxu0 0.0
        %1554 = vmatpush1.xpose.msra.mxu0 0.0
        %1555 = vmatprep.subr.mxu0 0.0
        %1556 = vmatpush1.xpose.msra.mxu0 0.0
        %1557 = vmatprep.subr.mxu0 0.0
        %1558 = vmatpush1.xpose.msra.mxu0 0.0
        %1559 = vmatprep.subr.mxu0 0.0
        %1560 = vmatpush1.xpose.msra.mxu0 0.0
        %1561 = vmatprep.subr.mxu0 0.0
        %1562 = vmatpush1.xpose.msra.mxu0 0.0
        %1563 = vmatprep.subr.mxu0 0.0
        %1564 = vmatpush1.xpose.msra.mxu0 0.0
        %1565 = vmatprep.subr.mxu0 0.0
        %1566 = vmatpush1.xpose.msra.mxu0 0.0
        %1567 = vmatprep.subr.mxu0 0.0
        %1568 = vmatpush1.xpose.msra.mxu0 0.0
        %1569 = vmatprep.subr.mxu0 0.0
        %1570 = vmatpush1.xpose.msra.mxu0 0.0
        %1571 = vmatprep.subr.mxu0 0.0
        %1572 = vmatpush1.xpose.msra.mxu0 0.0
        %1573 = vmatprep.subr.mxu0 0.0
        %1574 = vmatpush1.xpose.msra.mxu0 0.0
        %1575 = vmatprep.subr.mxu0 0.0
        %1576 = vmatpush1.xpose.msra.mxu0 0.0
        %1577 = vmatprep.subr.mxu0 0.0
        %1578 = vmatpush1.xpose.msra.mxu0 %v1547
        %1579 = vmatprep.subr.mxu0 0.0
        %1580 = vmatpush1.xpose.msra.mxu0 %v1544
        %1581 = vmatprep.subr.mxu0 0.0
        %1582 = vmatpush2.xpose.msra.mxu0 0.0
        %1583 = vmatprep.subr.mxu0 0.0
        %1584 = vmatpush2.xpose.msra.mxu0 0.0
        %1585 = vmatprep.subr.mxu0 0.0
        %1586 = vmatpush2.xpose.msra.mxu0 0.0
        %1587 = vmatprep.subr.mxu0 0.0
        %1588 = vmatpush2.xpose.msra.mxu0 0.0
        %1589 = vmatprep.subr.mxu0 0.0
        %1590 = vmatpush2.xpose.msra.mxu0 0.0
        %1591 = vmatprep.subr.mxu0 0.0
        %1592 = vmatpush2.xpose.msra.mxu0 0.0
        %1593 = vmatprep.subr.mxu0 0.0
        %1594 = vmatpush2.xpose.msra.mxu0 0.0
        %1595 = vmatprep.subr.mxu0 0.0
        %1596 = vmatpush2.xpose.msra.mxu0 0.0
        %1597 = vmatprep.subr.mxu0 0.0
        %1598 = vmatpush2.xpose.msra.mxu0 0.0
        %1599 = vmatprep.subr.mxu0 0.0
        %1600 = vmatpush2.xpose.msra.mxu0 0.0
        %1601 = vmatprep.subr.mxu0 0.0
        %1602 = vmatpush2.xpose.msra.mxu0 0.0
        %1603 = vmatprep.subr.mxu0 0.0
        %1604 = vmatpush2.xpose.msra.mxu0 0.0
        %1605 = vmatprep.subr.mxu0 0.0
        %1606 = vmatpush2.xpose.msra.mxu0 0.0
        %1607 = vmatprep.subr.mxu0 0.0
        %1608 = vmatpush2.xpose.msra.mxu0 0.0
        %1609 = vmatprep.subr.mxu0 0.0
        %1610 = vmatpush2.xpose.msra.mxu0 0.0
        %1611 = vmatprep.subr.mxu0 0.0
        %1612 = vmatpush2.xpose.msra.mxu0 0.0
        %1613 = vmatprep.mubr.f32.mxu0 0.0
        %1614 = vmatmul.mubr.f32.gmra.mxu0 %v1544
        %v1615 = vpop.f32.mrf.mxu0
        %v1616 = vadd.f32 0.0, %v1615
        %v1617 = vpop.f32.mrf.mxu0
        %1618 = vmatprep.mubr.f32.mxu0 0.0
        %1619 = vmatmul.mubr.f32.gmra.mxu0 %v1547
        %v1620 = vpop.f32.mrf.mxu0
        %v1621 = vadd.f32 0.0, %v1620
        %v1622 = vpop.f32.mrf.mxu0
        %1623 = vdwg.mxu0
        %v1624 = vlaneseq
        %v1625 = vshrl.u32 %v1624, 7
        %v1626 = vadd.s32 %v1625, 8
        %v1627 = vlaneseq
        %v1628 = vand.u32 %v1627, 127
        %vm1629 = vcmp.eq.s32.totalorder %v1625, %v1628
        %vm1630 = vcmp.eq.s32.totalorder %v1626, %v1628
        %v1631 = vsel %vm1629, 1, 0
        %v1632 = vsel %vm1630, 1, 0
        %v1633 = vcvt.s32.f32 %v1631
        %v1634 = vcvt.s32.f32 %v1632
        %v1635 = vsub.f32 %v1373, %v1633
        %v1636 = vsub.f32 %v1378, %v1634
        %v1637 = vsub.f32 %v1454, %v1633
        %v1638 = vsub.f32 %v1459, %v1634
        %v1639 = vsub.f32 %v1535, %v1633
        %v1640 = vsub.f32 %v1540, %v1634
        %v1641 = vsub.f32 %v1616, %v1633
        %v1642 = vsub.f32 %v1621, %v1634
        %v1643 = vmul.f32 %v1635, %v1635
        %v1644 = vmul.f32 %v1636, %v1636
        %v1645 = vmul.f32 %v1637, %v1637
        %v1646 = vmul.f32 %v1638, %v1638
        %v1647 = vmul.f32 %v1639, %v1639
        %v1648 = vmul.f32 %v1640, %v1640
        %v1649 = vmul.f32 %v1641, %v1641
        %v1650 = vmul.f32 %v1642, %v1642
        %vm1651 = vcmask 80896
        %v1652 = vsel %vm1651, %v1643, 0.0
        %1653 = vadd.xlane.f32.xlu0 %v1652
        %v1654 = vpop.xlane.xlu0 %1653
        %vm1655 = vcmask 74752
        %v1656 = vsel %vm1655, %v1644, 0.0
        %1657 = vadd.xlane.f32.xlu0 %v1656
        %v1658 = vpop.xlane.xlu0 %1657
        %v1659 = vsel %vm1651, %v1645, 0.0
        %1660 = vadd.xlane.f32.xlu0 %v1659
        %v1661 = vpop.xlane.xlu0 %1660
        %v1662 = vsel %vm1655, %v1646, 0.0
        %1663 = vadd.xlane.f32.xlu0 %v1662
        %v1664 = vpop.xlane.xlu0 %1663
        %v1665 = vsel %vm1651, %v1647, 0.0
        %1666 = vadd.xlane.f32.xlu0 %v1665
        %v1667 = vpop.xlane.xlu0 %1666
        %v1668 = vsel %vm1655, %v1648, 0.0
        %1669 = vadd.xlane.f32.xlu0 %v1668
        %v1670 = vpop.xlane.xlu0 %1669
        %v1671 = vsel %vm1651, %v1649, 0.0
        %1672 = vadd.xlane.f32.xlu0 %v1671
        %v1673 = vpop.xlane.xlu0 %1672
        %v1674 = vsel %vm1655, %v1650, 0.0
        %1675 = vadd.xlane.f32.xlu0 %v1674
        %v1676 = vpop.xlane.xlu0 %1675
        %vm1677 = vcmask 1041408
        %v1678 = vsel %vm1677, %v1658, 0.0
        %v1679 = vadd.f32 %v1654, %v1678
        %v1680 = vrot.slane %v1679, 4
        %v1681 = vadd.f32 %v1679, %v1680
        %v1682 = vrot.slane %v1681, 2
        %v1683 = vadd.f32 %v1681, %v1682
        %v1684 = vrot.slane %v1683, 1
        %v1685 = vadd.f32 %v1683, %v1684
        %v1686 = vsel %vm1677, %v1664, 0.0
        %v1687 = vadd.f32 %v1661, %v1686
        %v1688 = vrot.slane %v1687, 4
        %v1689 = vadd.f32 %v1687, %v1688
        %v1690 = vrot.slane %v1689, 2
        %v1691 = vadd.f32 %v1689, %v1690
        %v1692 = vrot.slane %v1691, 1
        %v1693 = vadd.f32 %v1691, %v1692
        %v1694 = vsel %vm1677, %v1670, 0.0
        %v1695 = vadd.f32 %v1667, %v1694
        %v1696 = vrot.slane %v1695, 4
        %v1697 = vadd.f32 %v1695, %v1696
        %v1698 = vrot.slane %v1697, 2
        %v1699 = vadd.f32 %v1697, %v1698
        %v1700 = vrot.slane %v1699, 1
        %v1701 = vadd.f32 %v1699, %v1700
        %v1702 = vsel %vm1677, %v1676, 0.0
        %v1703 = vadd.f32 %v1673, %v1702
        %v1704 = vrot.slane %v1703, 4
        %v1705 = vadd.f32 %v1703, %v1704
        %v1706 = vrot.slane %v1705, 2
        %v1707 = vadd.f32 %v1705, %v1706
        %v1708 = vrot.slane %v1707, 1
        %v1709 = vadd.f32 %v1707, %v1708
        %v1710 = vadd.f32 %v1685, 1e-10
        %v1711 = vadd.f32 %v1693, 1e-10
        %v1712 = vadd.f32 %v1701, 1e-10
        %v1713 = vadd.f32 %v1709, 1e-10
        %v1714 = vrsqrt.pop %v1710
        %v1715 = vmul.f32 %v1710, %v1714
        %vm1716 = vcmp.eq.f32.partialorder %v1710, inf
        %v1717 = vsel %vm1716, %v1710, %v1715
        %vm1718 = vcmp.eq.f32.partialorder %v1710, 0.0
        %v1719 = vand.u32 %v1710, 2147483648
        %v1720 = vsel %vm1718, %v1719, %v1717
        %v1721 = vrsqrt.pop %v1711
        %v1722 = vmul.f32 %v1711, %v1721
        %vm1723 = vcmp.eq.f32.partialorder %v1711, inf
        %v1724 = vsel %vm1723, %v1711, %v1722
        %vm1725 = vcmp.eq.f32.partialorder %v1711, 0.0
        %v1726 = vand.u32 %v1711, 2147483648
        %v1727 = vsel %vm1725, %v1726, %v1724
        %v1728 = vrsqrt.pop %v1712
        %v1729 = vmul.f32 %v1712, %v1728
        %vm1730 = vcmp.eq.f32.partialorder %v1712, inf
        %v1731 = vsel %vm1730, %v1712, %v1729
        %vm1732 = vcmp.eq.f32.partialorder %v1712, 0.0
        %v1733 = vand.u32 %v1712, 2147483648
        %v1734 = vsel %vm1732, %v1733, %v1731
        %v1735 = vrsqrt.pop %v1713
        %v1736 = vmul.f32 %v1713, %v1735
        %vm1737 = vcmp.eq.f32.partialorder %v1713, inf
        %v1738 = vsel %vm1737, %v1713, %v1736
        %vm1739 = vcmp.eq.f32.partialorder %v1713, 0.0
        %v1740 = vand.u32 %v1713, 2147483648
        %v1741 = vsel %vm1739, %v1740, %v1738
        %vm1742 = vcmask 0
        %1743 = vst.msk [vmem:[%s274] sm:$0x1] %vm1742, %v1720
        %1744 = vst.msk [vmem:[%s274 + $0x1] sm:$0x1] %vm1742, %v1727
        %1745 = vst.msk [vmem:[%s274 + $0x2] sm:$0x1] %vm1742, %v1734
        %1746 = vst.msk [vmem:[%s274 + $0x3] sm:$0x1] %vm1742, %v1741
        %s1747 = sand.u32 %s125, 1
        %s1748 = scalar_lea.sflag [#allocation4], %s1747
        %s1749 = sand.u32 %s125, 1
        %s1750 = smul.addr %s1749, 12
        %s1751 = scalar_lea.vmem [#allocation5], %s1750
        %s1752 = smul.u32 4, %s23
        %p1753 = scmp.lt.s32.totalorder %s1752, 7
        %s1754 = scalar_select %p1753, %s1752, 7
        %s1755 = scalar_lea.vmem %s5, %s1754
        // Predicated region
        $region41: #{tpu_custom_call.1} parent=35 // pred_check
          %p1756 = pneg %p135
        $region42: #{tpu_custom_call.1} parent=35 // pred_check_branch
          %1758 = sbr.rel (%p1756) target = $region44
        $region43: #{tpu_custom_call.1} parent=35 // pred_region
          %s1759 = smul.u32 4, %s23
          %s1761 = ssub.s32 192, 192
          %1762 = vsyncadd %s1748, %s1761
          %s1763 = smul.addr %s1759, 3
          %s1764 = smul.addr %s1763, 16
          %s1765 = scalar_lea.hbm %s4, %s1764
          %s1766 = sshll.u32 %s1751, 4
          %s1767 = int_to_ptr.vmem [resolvable:$true] %s1766
          %1772 = dma.vmem_to_hbm [thread:$0]  %s1767, 192, %s1765, %s1748, 48, 48, 3
        $region44: #{tpu_custom_call.1} parent=35 // pred_fallthru
          _
        // Predicated region
        $region45: #{tpu_custom_call.1} parent=35 // pred_check
          %p1773 = pneg %p161
        $region46: #{tpu_custom_call.1} parent=35 // pred_check_branch
          %1775 = sbr.rel (%p1773) target = $region48
        $region47: #{tpu_custom_call.1} parent=35 // pred_region
          %s1776 = smul.u32 4, %s23
        $region48: #{tpu_custom_call.1} parent=35 // pred_fallthru
          _
      $region36: #{tpu_custom_call.1} parent=5 // pred_fallthru
        _
      %p1777 = scmp.le.s32.totalorder 2, %s18
      // Predicated region
      $region49: #{tpu_custom_call.1} parent=5 // pred_check
        %p1778 = pneg %p1777
      $region50: #{tpu_custom_call.1} parent=5 // pred_check_branch
        %1780 = sbr.rel (%p1778) target = $region52
      $region51: #{tpu_custom_call.1} parent=5 // pred_region
        %s1781 = ssub.s32 %s18, 2
        // Predicated region
        $region53: #{tpu_custom_call.1} parent=51 // pred_check
          %p1782 = pneg %p141
        $region54: #{tpu_custom_call.1} parent=51 // pred_check_branch
          %1784 = sbr.rel (%p1782) target = $region56
        $region55: #{tpu_custom_call.1} parent=51 // pred_region
          %s1785 = sand.u32 %s126, 1
          %s1786 = scalar_lea.sflag [#allocation4], %s1785
          %s1787 = sand.u32 %s126, 1
          %s1788 = smul.addr %s1787, 12
          %s1789 = scalar_lea.vmem [#allocation5], %s1788
          %1790 = dma.done %s1786, 192
        $region56: #{tpu_custom_call.1} parent=51 // pred_fallthru
          _
        // Predicated region
        $region57: #{tpu_custom_call.1} parent=51 // pred_check
          %p1791 = pneg %p167
        $region58: #{tpu_custom_call.1} parent=51 // pred_check_branch
          %1793 = sbr.rel (%p1791) target = $region60
        $region59: #{tpu_custom_call.1} parent=51 // pred_region
          %s1794 = smul.u32 4, %s24
          %p1795 = scmp.lt.s32.totalorder %s1794, 7
          %s1796 = scalar_select %p1795, %s1794, 7
          %s1797 = scalar_lea.vmem %s5, %s1796
        $region60: #{tpu_custom_call.1} parent=51 // pred_fallthru
          _
      $region52: #{tpu_custom_call.1} parent=5 // pred_fallthru
        _
    $region6: #{tpu_custom_call.1} parent=1 // loop_footer
      %s22 = sadd.s32 1, %s18
    $region7: #{tpu_custom_call.1} parent=1 // loop_footer_branch
      %17 = sbr.rel target = $region3
    $region8: #{tpu_custom_call.1} parent=1 // loop_exit
      _
    %1798 = vsyncpa [#allocation3], 1
    %s1799 = scalar_lea.sflag [#allocation3], 1
    %1800 = vsyncpa %s1799, 1
    %1801 = vsyncpa [#allocation4], 1
    %s1802 = scalar_lea.sflag [#allocation4], 1
    %1803 = vsyncpa %s1802, 1

</llo_original>
